<compile_context>
chip_gen: v7x
topology: tpu7x:2x2x1
jax: 0.10.0
libtpu: 0.0.40
codegen_flags: <defaults>
</compile_context>

<pallas_src>
import jax
import jax.numpy as jnp
from jax.experimental import pallas as pl
from jax.experimental.pallas import tpu as pltpu

NEG_SLOPE = 0.01
BN_EPS = 1e-5

IN_FEATURES = 32          # X_train.shape[1] in the reference script (synthetic choice)
H1, H2, H3, H4, OUT = 128, 64, 32, 16, 1

MAX_TILE_N = 4096         # batch-tile cap: multiple of 256, well under VMEM on all gens


def _leaky_relu(x):
    return jnp.where(x > 0, x, NEG_SLOPE * x)


def _round_up(n, m):
    return ((n + m - 1) // m) * m


def _pick_tile_n(n, max_tile=MAX_TILE_N):
    """Multiple of 256; for large N keep >= 2 grid steps (v7x megacore)."""
    if n <= 256:
        return 256
    return min(max_tile, _round_up(pl.cdiv(n, 2), 256))


def mlp_kernel(x_ref,
               w1_ref, b1_ref,
               w2_ref, b2_ref,
               w3_ref, b3_ref,
               w4_ref, b4_ref,
               w5_ref, b5_ref,
               o_ref):
    # x tile is bf16; all matmuls accumulate in f32 on the MXU.
    x = x_ref[...]

    # fc1 (+ folded bn1) -> leaky_relu    (dropout1 = identity in eval mode)
    h = jnp.dot(x, w1_ref[...], preferred_element_type=jnp.float32) + b1_ref[...]
    h = _leaky_relu(h)

    # fc2 (+ folded bn2) -> leaky_relu
    h = jnp.dot(h.astype(jnp.bfloat16), w2_ref[...],
                preferred_element_type=jnp.float32) + b2_ref[...]
    h = _leaky_relu(h)

    # fc3 (+ folded bn3) -> leaky_relu
    h = jnp.dot(h.astype(jnp.bfloat16), w3_ref[...],
                preferred_element_type=jnp.float32) + b3_ref[...]
    h = _leaky_relu(h)

    # fc4 -> leaky_relu
    h = jnp.dot(h.astype(jnp.bfloat16), w4_ref[...],
                preferred_element_type=jnp.float32) + b4_ref[...]
    h = _leaky_relu(h)

    # fc5 (16 -> 1), emitted lane-dense: contract the 16-wide feature dim of
    # w5 (1, 16) against dim 1 of h (tile_n, 16) -> (1, tile_n) f32.
    y = jax.lax.dot_general(
        w5_ref[...], h.astype(jnp.bfloat16),
        dimension_numbers=(((1,), (1,)), ((), ())),
        preferred_element_type=jnp.float32) + b5_ref[...]

    # Output block is (1, 1, tile_n): full-lane, unmasked stores.
    o_ref[...] = y[None]


def init_params(key):
    """Deterministic synthetic parameters (PyTorch Linear/BatchNorm shapes)."""
    ks = jax.random.split(key, 24)

    def lin(kw, kb, fin, fout):
        lim = 1.0 / jnp.sqrt(fin)
        w = jax.random.uniform(kw, (fin, fout), jnp.float32, -lim, lim)
        b = jax.random.uniform(kb, (1, fout), jnp.float32, -lim, lim)
        return w, b

    def bn(kg, kb, km, kv, dim):
        gamma = 1.0 + 0.1 * jax.random.normal(kg, (1, dim), jnp.float32)
        beta = 0.1 * jax.random.normal(kb, (1, dim), jnp.float32)
        rmean = 0.1 * jax.random.normal(km, (1, dim), jnp.float32)
        rvar = 1.0 + 0.1 * jax.random.uniform(kv, (1, dim), jnp.float32)
        return gamma, beta, rmean, rvar

    p = {}
    p["w1"], p["b1"] = lin(ks[0], ks[1], IN_FEATURES, H1)
    p["bn1"] = bn(ks[2], ks[3], ks[4], ks[5], H1)
    p["w2"], p["b2"] = lin(ks[6], ks[7], H1, H2)
    p["bn2"] = bn(ks[8], ks[9], ks[10], ks[11], H2)
    p["w3"], p["b3"] = lin(ks[12], ks[13], H2, H3)
    p["bn3"] = bn(ks[14], ks[15], ks[16], ks[17], H3)
    p["w4"], p["b4"] = lin(ks[18], ks[19], H3, H4)
    p["w5"], p["b5"] = lin(ks[20], ks[21], H4, OUT)
    return p


def _fold_bn(bn_params):
    gamma, beta, rmean, rvar = bn_params
    scale = gamma / jnp.sqrt(rvar + BN_EPS)
    shift = beta - rmean * scale
    return scale, shift


def fold_params(params):
    """Fold BN into fc1-3 weights/biases (f32 math), cast matmul weights to bf16.

    Call ONCE outside the per-step inference path (the fold/cast launches a
    handful of tiny XLA ops that would otherwise dominate small-batch latency).
    """
    s1, t1 = _fold_bn(params["bn1"])
    s2, t2 = _fold_bn(params["bn2"])
    s3, t3 = _fold_bn(params["bn3"])

    w1f = (params["w1"] * s1).astype(jnp.bfloat16)
    b1f = params["b1"] * s1 + t1
    w2f = (params["w2"] * s2).astype(jnp.bfloat16)
    b2f = params["b2"] * s2 + t2
    w3f = (params["w3"] * s3).astype(jnp.bfloat16)
    b3f = params["b3"] * s3 + t3
    w4f = params["w4"].astype(jnp.bfloat16)
    b4f = params["b4"]
    w5f = params["w5"].reshape(1, H4).astype(jnp.bfloat16)   # (1, 16) bf16
    b5f = params["b5"].reshape(1, OUT)                        # (1, 1) f32
    return (w1f, b1f, w2f, b2f, w3f, b3f, w4f, b4f, w5f, b5f)


def _full_spec(shape):
    return pl.BlockSpec(shape, lambda i, s=len(shape): (0,) * s)


def _enhanced_mlp_forward_impl(x, folded):
    N, F = x.shape
    assert F == IN_FEATURES

    tile_n = _pick_tile_n(N)
    n_tiles = pl.cdiv(N, tile_n)
    n_pad = n_tiles * tile_n

    # Pad the batch to a multiple of tile_n; rows are independent so padding is benign.
    x_bf16 = x.astype(jnp.bfloat16)
    if n_pad != N:
        x_bf16 = jnp.pad(x_bf16, ((0, n_pad - N), (0, 0)))

    in_specs = [
        pl.BlockSpec((tile_n, F), lambda i: (i, 0)),          # x tile (streams)
        _full_spec((F, H1)), _full_spec((1, H1)),
        _full_spec((H1, H2)), _full_spec((1, H2)),
        _full_spec((H2, H3)), _full_spec((1, H3)),
        _full_spec((H3, H4)), _full_spec((1, H4)),
        _full_spec((1, H4)), _full_spec((1, OUT)),
    ]

    flops = 2 * n_pad * (F * H1 + H1 * H2 + H2 * H3 + H3 * H4 + H4 * OUT)
    weight_bytes = (2 * (F * H1 + H1 * H2 + H2 * H3 + H3 * H4 + H4)
                    + 4 * (H1 + H2 + H3 + H4 + OUT))
    bytes_accessed = n_pad * F * 2 + n_pad * OUT * 4 + weight_bytes

    out = pl.pallas_call(
        mlp_kernel,
        # Lane-dense output: (n_tiles, 1, tile_n) f32, one (1, 1, tile_n) row per step.
        out_shape=jax.ShapeDtypeStruct((n_tiles, 1, tile_n), jnp.float32),
        grid_spec=pltpu.PrefetchScalarGridSpec(
            num_scalar_prefetch=0,
            grid=(n_tiles,),
            in_specs=in_specs,
            out_specs=pl.BlockSpec((1, 1, tile_n), lambda i: (i, 0, 0)),
        ),
        compiler_params=pltpu.CompilerParams(
            dimension_semantics=("parallel",)),
        cost_estimate=pl.CostEstimate(
            flops=flops, transcendentals=0, bytes_accessed=bytes_accessed),
    )(x_bf16, *folded)

    # (n_tiles, 1, tile_n) -> (n_pad,) -> (N, 1)
    return out.reshape(n_pad)[:N].reshape(N, OUT)


# Jitted entry point: weight prep is NOT inside (fold_params is called once by
# the caller), so steady-state latency is just the fused kernel + pad/reshape.
enhanced_mlp_forward = jax.jit(_enhanced_mlp_forward_impl)


def reference_forward(x, folded):
    """Plain-JAX reference with the same bf16-input / f32-accumulate semantics."""
    (w1f, b1f, w2f, b2f, w3f, b3f, w4f, b4f, w5f, b5f) = folded
    h = x.astype(jnp.bfloat16)
    h = _leaky_relu(jnp.dot(h, w1f, preferred_element_type=jnp.float32) + b1f)
    h = _leaky_relu(jnp.dot(h.astype(jnp.bfloat16), w2f,
                            preferred_element_type=jnp.float32) + b2f)
    h = _leaky_relu(jnp.dot(h.astype(jnp.bfloat16), w3f,
                            preferred_element_type=jnp.float32) + b3f)
    h = _leaky_relu(jnp.dot(h.astype(jnp.bfloat16), w4f,
                            preferred_element_type=jnp.float32) + b4f)
    return jnp.dot(h.astype(jnp.bfloat16), w5f.T,
                   preferred_element_type=jnp.float32) + b5f


def reference_forward_f32(x, params):
    """Pure-f32 reference of the original module (eval mode) for a sanity check."""
    s1, t1 = _fold_bn(params["bn1"])
    s2, t2 = _fold_bn(params["bn2"])
    s3, t3 = _fold_bn(params["bn3"])
    h = _leaky_relu((x @ params["w1"] + params["b1"]) * s1 + t1)
    h = _leaky_relu((h @ params["w2"] + params["b2"]) * s2 + t2)
    h = _leaky_relu((h @ params["w3"] + params["b3"]) * s3 + t3)
    h = _leaky_relu(h @ params["w4"] + params["b4"])
    return h @ params["w5"] + params["b5"]


if __name__ == "__main__":
    key = jax.random.PRNGKey(0)
    kx, kp = jax.random.split(key)
    batch = 8
    x = jax.random.normal(kx, (batch, IN_FEATURES), jnp.float32)
    params = init_params(kp)

    # Weight prep hoisted out of the per-call path (done once).
    folded = fold_params(params)

    y = enhanced_mlp_forward(x, folded)
    jax.block_until_ready(y)
    assert y.shape == (batch, OUT)

    # Tight check vs. a reference with identical bf16/f32 numerics.
    y_ref = reference_forward(x, folded)
    assert jnp.allclose(y, y_ref, atol=1e-4, rtol=1e-4)

    # Loose check vs. the pure-f32 original-module semantics (bf16 rounding error only).
    y_f32 = reference_forward_f32(x, params)
    assert jnp.allclose(y, y_f32, atol=5e-2, rtol=5e-2)

    print("KERNEL_OK")
</pallas_src>

<mosaic_0001>
module attributes {stable_mosaic.version = 11 : i64} {
  func.func @mlp_kernel(%arg0: i32, %arg1: memref<256x32xbf16, #tpu.memory_space<vmem>>, %arg2: memref<32x128xbf16, #tpu.memory_space<vmem>>, %arg3: memref<1x128xf32, #tpu.memory_space<vmem>>, %arg4: memref<128x64xbf16, #tpu.memory_space<vmem>>, %arg5: memref<1x64xf32, #tpu.memory_space<vmem>>, %arg6: memref<64x32xbf16, #tpu.memory_space<vmem>>, %arg7: memref<1x32xf32, #tpu.memory_space<vmem>>, %arg8: memref<32x16xbf16, #tpu.memory_space<vmem>>, %arg9: memref<1x16xf32, #tpu.memory_space<vmem>>, %arg10: memref<1x16xbf16, #tpu.memory_space<vmem>>, %arg11: memref<1x1xf32, #tpu.memory_space<vmem>>, %arg12: memref<1x1x256xf32, #tpu.memory_space<vmem>>) attributes {dimension_semantics = [#tpu.dimension_semantics<parallel>], iteration_bounds = array<i64: 1>, scalar_prefetch = 0 : i64, scratch_operands = 0 : i64, tpu.core_type = #tpu.core_type<tc>, window_params = [{transform_indices = @transform_0, window_bounds = array<i64: 256, 32>}, {pipeline_mode = #tpu.pipeline_mode<synchronous>, transform_indices = @transform_1, window_bounds = array<i64: 32, 128>}, {pipeline_mode = #tpu.pipeline_mode<synchronous>, transform_indices = @transform_2, window_bounds = array<i64: 1, 128>}, {pipeline_mode = #tpu.pipeline_mode<synchronous>, transform_indices = @transform_3, window_bounds = array<i64: 128, 64>}, {pipeline_mode = #tpu.pipeline_mode<synchronous>, transform_indices = @transform_4, window_bounds = array<i64: 1, 64>}, {pipeline_mode = #tpu.pipeline_mode<synchronous>, transform_indices = @transform_5, window_bounds = array<i64: 64, 32>}, {pipeline_mode = #tpu.pipeline_mode<synchronous>, transform_indices = @transform_6, window_bounds = array<i64: 1, 32>}, {pipeline_mode = #tpu.pipeline_mode<synchronous>, transform_indices = @transform_7, window_bounds = array<i64: 32, 16>}, {pipeline_mode = #tpu.pipeline_mode<synchronous>, transform_indices = @transform_8, window_bounds = array<i64: 1, 16>}, {pipeline_mode = #tpu.pipeline_mode<synchronous>, transform_indices = @transform_9, window_bounds = array<i64: 1, 16>}, {pipeline_mode = #tpu.pipeline_mode<synchronous>, transform_indices = @transform_10, window_bounds = array<i64: 1, 1>}, {transform_indices = @transform_11, window_bounds = array<i64: 1, 1, 256>}]} {
    %c0 = arith.constant 0 : index
    %c0_0 = arith.constant 0 : index
    %0 = vector.load %arg1[%c0, %c0_0] : memref<256x32xbf16, #tpu.memory_space<vmem>>, vector<256x32xbf16>
    %c0_1 = arith.constant 0 : index
    %c0_2 = arith.constant 0 : index
    %1 = vector.load %arg2[%c0_1, %c0_2] : memref<32x128xbf16, #tpu.memory_space<vmem>>, vector<32x128xbf16>
    %cst = arith.constant dense<0.000000e+00> : vector<256x128xf32>
    %2 = tpu.matmul %0, %1, %cst {dimension_numbers = #tpu.dot_dimension_numbers<[1], [0], [0], [1], [0, 0, 1, 1], [], []>} : vector<256x32xbf16>, vector<32x128xbf16>, vector<256x128xf32> -> vector<256x128xf32>
    %c0_3 = arith.constant 0 : index
    %c0_4 = arith.constant 0 : index
    %3 = vector.load %arg3[%c0_3, %c0_4] : memref<1x128xf32, #tpu.memory_space<vmem>>, vector<1x128xf32>
    %4 = vector.broadcast %3 : vector<1x128xf32> to vector<256x128xf32>
    %5 = arith.addf %2, %4 : vector<256x128xf32>
    %cst_5 = arith.constant 0.000000e+00 : f32
    %6 = vector.broadcast %cst_5 : f32 to vector<256x128xf32>
    %7 = arith.cmpf ogt, %5, %6 : vector<256x128xf32>
    %cst_6 = arith.constant 0.00999999977 : f32
    %8 = vector.broadcast %cst_6 : f32 to vector<256x128xf32>
    %9 = arith.mulf %8, %5 : vector<256x128xf32>
    %10 = arith.select %7, %5, %9 : vector<256x128xi1>, vector<256x128xf32>
    %11 = arith.truncf %10 : vector<256x128xf32> to vector<256x128xbf16>
    %c0_7 = arith.constant 0 : index
    %c0_8 = arith.constant 0 : index
    %12 = vector.load %arg4[%c0_7, %c0_8] : memref<128x64xbf16, #tpu.memory_space<vmem>>, vector<128x64xbf16>
    %cst_9 = arith.constant dense<0.000000e+00> : vector<256x64xf32>
    %13 = tpu.matmul %11, %12, %cst_9 {dimension_numbers = #tpu.dot_dimension_numbers<[1], [0], [0], [1], [0, 0, 1, 1], [], []>} : vector<256x128xbf16>, vector<128x64xbf16>, vector<256x64xf32> -> vector<256x64xf32>
    %c0_10 = arith.constant 0 : index
    %c0_11 = arith.constant 0 : index
    %14 = vector.load %arg5[%c0_10, %c0_11] : memref<1x64xf32, #tpu.memory_space<vmem>>, vector<1x64xf32>
    %15 = vector.broadcast %14 : vector<1x64xf32> to vector<256x64xf32>
    %16 = arith.addf %13, %15 : vector<256x64xf32>
    %cst_12 = arith.constant 0.000000e+00 : f32
    %17 = vector.broadcast %cst_12 : f32 to vector<256x64xf32>
    %18 = arith.cmpf ogt, %16, %17 : vector<256x64xf32>
    %cst_13 = arith.constant 0.00999999977 : f32
    %19 = vector.broadcast %cst_13 : f32 to vector<256x64xf32>
    %20 = arith.mulf %19, %16 : vector<256x64xf32>
    %21 = arith.select %18, %16, %20 : vector<256x64xi1>, vector<256x64xf32>
    %22 = arith.truncf %21 : vector<256x64xf32> to vector<256x64xbf16>
    %c0_14 = arith.constant 0 : index
    %c0_15 = arith.constant 0 : index
    %23 = vector.load %arg6[%c0_14, %c0_15] : memref<64x32xbf16, #tpu.memory_space<vmem>>, vector<64x32xbf16>
    %cst_16 = arith.constant dense<0.000000e+00> : vector<256x32xf32>
    %24 = tpu.matmul %22, %23, %cst_16 {dimension_numbers = #tpu.dot_dimension_numbers<[1], [0], [0], [1], [0, 0, 1, 1], [], []>} : vector<256x64xbf16>, vector<64x32xbf16>, vector<256x32xf32> -> vector<256x32xf32>
    %c0_17 = arith.constant 0 : index
    %c0_18 = arith.constant 0 : index
    %25 = vector.load %arg7[%c0_17, %c0_18] : memref<1x32xf32, #tpu.memory_space<vmem>>, vector<1x32xf32>
    %26 = vector.broadcast %25 : vector<1x32xf32> to vector<256x32xf32>
    %27 = arith.addf %24, %26 : vector<256x32xf32>
    %cst_19 = arith.constant 0.000000e+00 : f32
    %28 = vector.broadcast %cst_19 : f32 to vector<256x32xf32>
    %29 = arith.cmpf ogt, %27, %28 : vector<256x32xf32>
    %cst_20 = arith.constant 0.00999999977 : f32
    %30 = vector.broadcast %cst_20 : f32 to vector<256x32xf32>
    %31 = arith.mulf %30, %27 : vector<256x32xf32>
    %32 = arith.select %29, %27, %31 : vector<256x32xi1>, vector<256x32xf32>
    %33 = arith.truncf %32 : vector<256x32xf32> to vector<256x32xbf16>
    %c0_21 = arith.constant 0 : index
    %c0_22 = arith.constant 0 : index
    %34 = vector.load %arg8[%c0_21, %c0_22] : memref<32x16xbf16, #tpu.memory_space<vmem>>, vector<32x16xbf16>
    %cst_23 = arith.constant dense<0.000000e+00> : vector<256x16xf32>
    %35 = tpu.matmul %33, %34, %cst_23 {dimension_numbers = #tpu.dot_dimension_numbers<[1], [0], [0], [1], [0, 0, 1, 1], [], []>} : vector<256x32xbf16>, vector<32x16xbf16>, vector<256x16xf32> -> vector<256x16xf32>
    %c0_24 = arith.constant 0 : index
    %c0_25 = arith.constant 0 : index
    %36 = vector.load %arg9[%c0_24, %c0_25] : memref<1x16xf32, #tpu.memory_space<vmem>>, vector<1x16xf32>
    %37 = vector.broadcast %36 : vector<1x16xf32> to vector<256x16xf32>
    %38 = arith.addf %35, %37 : vector<256x16xf32>
    %cst_26 = arith.constant 0.000000e+00 : f32
    %39 = vector.broadcast %cst_26 : f32 to vector<256x16xf32>
    %40 = arith.cmpf ogt, %38, %39 : vector<256x16xf32>
    %cst_27 = arith.constant 0.00999999977 : f32
    %41 = vector.broadcast %cst_27 : f32 to vector<256x16xf32>
    %42 = arith.mulf %41, %38 : vector<256x16xf32>
    %43 = arith.select %40, %38, %42 : vector<256x16xi1>, vector<256x16xf32>
    %c0_28 = arith.constant 0 : index
    %c0_29 = arith.constant 0 : index
    %44 = vector.load %arg10[%c0_28, %c0_29] : memref<1x16xbf16, #tpu.memory_space<vmem>>, vector<1x16xbf16>
    %45 = arith.truncf %43 : vector<256x16xf32> to vector<256x16xbf16>
    %cst_30 = arith.constant dense<0.000000e+00> : vector<1x256xf32>
    %46 = tpu.matmul %44, %45, %cst_30 {dimension_numbers = #tpu.dot_dimension_numbers<[1], [1], [0], [0], [0, 0, 1, 0], [], []>} : vector<1x16xbf16>, vector<256x16xbf16>, vector<1x256xf32> -> vector<1x256xf32>
    %c0_31 = arith.constant 0 : index
    %c0_32 = arith.constant 0 : index
    %47 = vector.load %arg11[%c0_31, %c0_32] : memref<1x1xf32, #tpu.memory_space<vmem>>, vector<1x1xf32>
    %48 = vector.broadcast %47 : vector<1x1xf32> to vector<1x256xf32>
    %49 = arith.addf %46, %48 : vector<1x256xf32>
    %50 = vector.shape_cast %49 : vector<1x256xf32> to vector<1x1x256xf32>
    %c0_33 = arith.constant 0 : index
    %c0_34 = arith.constant 0 : index
    %c0_35 = arith.constant 0 : index
    %51 = vector.load %arg12[%c0_33, %c0_34, %c0_35] : memref<1x1x256xf32, #tpu.memory_space<vmem>>, vector<1x1x256xf32>
    tpu.vector_store %arg12[%c0_33, %c0_34, %c0_35], %50 {strides = array<i32>} : memref<1x1x256xf32, #tpu.memory_space<vmem>>, vector<1x1x256xf32>,
    return
  }
  func.func @transform_0(%arg0: i32) -> (i32, i32) {
    %c0_i32 = arith.constant 0 : i32
    %c0_i32_0 = arith.constant 0 : i32
    return %arg0, %c0_i32 : i32, i32
  }
  func.func @transform_1(%arg0: i32) -> (i32, i32) {
    %c0_i32 = arith.constant 0 : i32
    %c0_i32_0 = arith.constant 0 : i32
    %c0_i32_1 = arith.constant 0 : i32
    return %c0_i32, %c0_i32_0 : i32, i32
  }
  func.func @transform_2(%arg0: i32) -> (i32, i32) {
    %c0_i32 = arith.constant 0 : i32
    %c0_i32_0 = arith.constant 0 : i32
    %c0_i32_1 = arith.constant 0 : i32
    return %c0_i32, %c0_i32_0 : i32, i32
  }
  func.func @transform_3(%arg0: i32) -> (i32, i32) {
    %c0_i32 = arith.constant 0 : i32
    %c0_i32_0 = arith.constant 0 : i32
    %c0_i32_1 = arith.constant 0 : i32
    return %c0_i32, %c0_i32_0 : i32, i32
  }
  func.func @transform_4(%arg0: i32) -> (i32, i32) {
    %c0_i32 = arith.constant 0 : i32
    %c0_i32_0 = arith.constant 0 : i32
    %c0_i32_1 = arith.constant 0 : i32
    return %c0_i32, %c0_i32_0 : i32, i32
  }
  func.func @transform_5(%arg0: i32) -> (i32, i32) {
    %c0_i32 = arith.constant 0 : i32
    %c0_i32_0 = arith.constant 0 : i32
    %c0_i32_1 = arith.constant 0 : i32
    return %c0_i32, %c0_i32_0 : i32, i32
  }
  func.func @transform_6(%arg0: i32) -> (i32, i32) {
    %c0_i32 = arith.constant 0 : i32
    %c0_i32_0 = arith.constant 0 : i32
    %c0_i32_1 = arith.constant 0 : i32
    return %c0_i32, %c0_i32_0 : i32, i32
  }
  func.func @transform_7(%arg0: i32) -> (i32, i32) {
    %c0_i32 = arith.constant 0 : i32
    %c0_i32_0 = arith.constant 0 : i32
    %c0_i32_1 = arith.constant 0 : i32
    return %c0_i32, %c0_i32_0 : i32, i32
  }
  func.func @transform_8(%arg0: i32) -> (i32, i32) {
    %c0_i32 = arith.constant 0 : i32
    %c0_i32_0 = arith.constant 0 : i32
    %c0_i32_1 = arith.constant 0 : i32
    return %c0_i32, %c0_i32_0 : i32, i32
  }
  func.func @transform_9(%arg0: i32) -> (i32, i32) {
    %c0_i32 = arith.constant 0 : i32
    %c0_i32_0 = arith.constant 0 : i32
    %c0_i32_1 = arith.constant 0 : i32
    return %c0_i32, %c0_i32_0 : i32, i32
  }
  func.func @transform_10(%arg0: i32) -> (i32, i32) {
    %c0_i32 = arith.constant 0 : i32
    %c0_i32_0 = arith.constant 0 : i32
    %c0_i32_1 = arith.constant 0 : i32
    return %c0_i32, %c0_i32_0 : i32, i32
  }
  func.func @transform_11(%arg0: i32) -> (i32, i32, i32) {
    %c0_i32 = arith.constant 0 : i32
    %c0_i32_0 = arith.constant 0 : i32
    %c0_i32_1 = arith.constant 0 : i32
    return %arg0, %c0_i32, %c0_i32_0 : i32, i32, i32
  }
}

</mosaic_0001>

<llo_original>
// kernel: _enhanced_mlp_forward_impl.1
$region0: #{_enhanced_mlp_forward_impl.1}
  #allocation0 [shape = 'u32[]', space=smem, size = 0x4, offset = 0x4, fixed_abs, tag = 'smem constant byte address 0x4 - core index']
  #allocation1 [shape = 'u32[144,128]{1,0:T(1,128)}', space=vmem, size = 0x12000, scoped, tag = 'internal scratch']
  #allocation2 [shape = 'f32[1,1]{1,0:T(1,128)S(1)}', space=vmem, size = 0x200, scoped, tag = 'scoped memory for _enhanced_mlp_forward_impl.1']
  %s0 = inlined_call_operand.vmem [shape: bf16[256,32], index: 0, kind: input, shape index: {}]
  %s1 = inlined_call_operand.vmem [shape: bf16[32,128], index: 1, kind: input, shape index: {}]
  %s2 = inlined_call_operand.vmem [shape: f32[1,128], index: 2, kind: input, shape index: {}]
  %s3 = inlined_call_operand.vmem [shape: bf16[128,64], index: 3, kind: input, shape index: {}]
  %s4 = inlined_call_operand.vmem [shape: f32[1,64], index: 4, kind: input, shape index: {}]
  %s5 = inlined_call_operand.vmem [shape: bf16[64,32], index: 5, kind: input, shape index: {}]
  %s6 = inlined_call_operand.vmem [shape: f32[1,32], index: 6, kind: input, shape index: {}]
  %s7 = inlined_call_operand.vmem [shape: bf16[32,16], index: 7, kind: input, shape index: {}]
  %s8 = inlined_call_operand.vmem [shape: f32[1,16], index: 8, kind: input, shape index: {}]
  %s9 = inlined_call_operand.vmem [shape: bf16[1,16], index: 9, kind: input, shape index: {}]
  %s10 = inlined_call_operand.<no memory space> [shape: f32[1,1], index: 10, kind: input, shape index: {}]
  %s11 = inlined_call_operand.vmem [shape: f32[1,1,256], index: 11, kind: output, shape index: {}]
  %s12 = sld [smem:[#allocation0]]
  $region54: #{_enhanced_mlp_forward_impl.1} parent=0
    _
  %s14 = ssub.s32 1, %s12
  %s15 = scalar_select 0, %s14, %s12
  %v16 = vstv %s10
  %17 = vst [vmem:[#allocation2] sm:$0x1] %v16
  // Predicated region
  $region2: #{_enhanced_mlp_forward_impl.1} parent=0 // pred_check
    _
  $region3: #{_enhanced_mlp_forward_impl.1} parent=0 // pred_check_branch
    %19 = sbr.rel (0) target = $region5
  $region4: #{_enhanced_mlp_forward_impl.1} parent=0 // pred_region
    _
  $region5: #{_enhanced_mlp_forward_impl.1} parent=0 // pred_fallthru
    _
  // Predicated region
  $region6: #{_enhanced_mlp_forward_impl.1} parent=0 // pred_check
    _
  $region7: #{_enhanced_mlp_forward_impl.1} parent=0 // pred_check_branch
    %21 = sbr.rel (0) target = $region9
  $region8: #{_enhanced_mlp_forward_impl.1} parent=0 // pred_region
    _
  $region9: #{_enhanced_mlp_forward_impl.1} parent=0 // pred_fallthru
    _
  // Predicated region
  $region10: #{_enhanced_mlp_forward_impl.1} parent=0 // pred_check
    _
  $region11: #{_enhanced_mlp_forward_impl.1} parent=0 // pred_check_branch
    %23 = sbr.rel (0) target = $region13
  $region12: #{_enhanced_mlp_forward_impl.1} parent=0 // pred_region
    _
  $region13: #{_enhanced_mlp_forward_impl.1} parent=0 // pred_fallthru
    _
  // Predicated region
  $region14: #{_enhanced_mlp_forward_impl.1} parent=0 // pred_check
    _
  $region15: #{_enhanced_mlp_forward_impl.1} parent=0 // pred_check_branch
    %25 = sbr.rel (0) target = $region17
  $region16: #{_enhanced_mlp_forward_impl.1} parent=0 // pred_region
    _
  $region17: #{_enhanced_mlp_forward_impl.1} parent=0 // pred_fallthru
    _
  // Predicated region
  $region18: #{_enhanced_mlp_forward_impl.1} parent=0 // pred_check
    _
  $region19: #{_enhanced_mlp_forward_impl.1} parent=0 // pred_check_branch
    %27 = sbr.rel (0) target = $region21
  $region20: #{_enhanced_mlp_forward_impl.1} parent=0 // pred_region
    _
  $region21: #{_enhanced_mlp_forward_impl.1} parent=0 // pred_fallthru
    _
  // Predicated region
  $region22: #{_enhanced_mlp_forward_impl.1} parent=0 // pred_check
    _
  $region23: #{_enhanced_mlp_forward_impl.1} parent=0 // pred_check_branch
    %29 = sbr.rel (0) target = $region25
  $region24: #{_enhanced_mlp_forward_impl.1} parent=0 // pred_region
    _
  $region25: #{_enhanced_mlp_forward_impl.1} parent=0 // pred_fallthru
    _
  // Predicated region
  $region26: #{_enhanced_mlp_forward_impl.1} parent=0 // pred_check
    _
  $region27: #{_enhanced_mlp_forward_impl.1} parent=0 // pred_check_branch
    %31 = sbr.rel (0) target = $region29
  $region28: #{_enhanced_mlp_forward_impl.1} parent=0 // pred_region
    _
  $region29: #{_enhanced_mlp_forward_impl.1} parent=0 // pred_fallthru
    _
  // Predicated region
  $region30: #{_enhanced_mlp_forward_impl.1} parent=0 // pred_check
    _
  $region31: #{_enhanced_mlp_forward_impl.1} parent=0 // pred_check_branch
    %33 = sbr.rel (0) target = $region33
  $region32: #{_enhanced_mlp_forward_impl.1} parent=0 // pred_region
    _
  $region33: #{_enhanced_mlp_forward_impl.1} parent=0 // pred_fallthru
    _
  // Predicated region
  $region34: #{_enhanced_mlp_forward_impl.1} parent=0 // pred_check
    _
  $region35: #{_enhanced_mlp_forward_impl.1} parent=0 // pred_check_branch
    %35 = sbr.rel (0) target = $region37
  $region36: #{_enhanced_mlp_forward_impl.1} parent=0 // pred_region
    _
  $region37: #{_enhanced_mlp_forward_impl.1} parent=0 // pred_fallthru
    _
  // Predicated region
  $region38: #{_enhanced_mlp_forward_impl.1} parent=0 // pred_check
    _
  $region39: #{_enhanced_mlp_forward_impl.1} parent=0 // pred_check_branch
    %37 = sbr.rel (0) target = $region41
  $region40: #{_enhanced_mlp_forward_impl.1} parent=0 // pred_region
    _
  $region41: #{_enhanced_mlp_forward_impl.1} parent=0 // pred_fallthru
    _
  // Predicated region
  $region42: #{_enhanced_mlp_forward_impl.1} parent=0 // pred_check
    _
  $region43: #{_enhanced_mlp_forward_impl.1} parent=0 // pred_check_branch
    %39 = sbr.rel (0) target = $region45
  $region44: #{_enhanced_mlp_forward_impl.1} parent=0 // pred_region
    _
  $region45: #{_enhanced_mlp_forward_impl.1} parent=0 // pred_fallthru
    _
  %v41 = vld [vmem:[%s0] sm:$0xf]
  %v42 = vld [vmem:[%s0 + $0x4] sm:$0xf]
  %v43 = vld [vmem:[%s0 + $0x8] sm:$0xf]
  %v44 = vld [vmem:[%s0 + $0xc] sm:$0xf]
  %v45 = vld [vmem:[%s0 + $0x10] sm:$0xf]
  %v46 = vld [vmem:[%s0 + $0x14] sm:$0xf]
  %v47 = vld [vmem:[%s0 + $0x18] sm:$0xf]
  %v48 = vld [vmem:[%s0 + $0x1c] sm:$0xf]
  %v49 = vld [vmem:[%s0 + $0x20] sm:$0xf]
  %v50 = vld [vmem:[%s0 + $0x24] sm:$0xf]
  %v51 = vld [vmem:[%s0 + $0x28] sm:$0xf]
  %v52 = vld [vmem:[%s0 + $0x2c] sm:$0xf]
  %v53 = vld [vmem:[%s0 + $0x30] sm:$0xf]
  %v54 = vld [vmem:[%s0 + $0x34] sm:$0xf]
  %v55 = vld [vmem:[%s0 + $0x38] sm:$0xf]
  %v56 = vld [vmem:[%s0 + $0x3c] sm:$0xf]
  %v57 = vld [vmem:[%s0 + $0x40] sm:$0xf]
  %v58 = vld [vmem:[%s0 + $0x44] sm:$0xf]
  %v59 = vld [vmem:[%s0 + $0x48] sm:$0xf]
  %v60 = vld [vmem:[%s0 + $0x4c] sm:$0xf]
  %v61 = vld [vmem:[%s0 + $0x50] sm:$0xf]
  %v62 = vld [vmem:[%s0 + $0x54] sm:$0xf]
  %v63 = vld [vmem:[%s0 + $0x58] sm:$0xf]
  %v64 = vld [vmem:[%s0 + $0x5c] sm:$0xf]
  %v65 = vld [vmem:[%s0 + $0x60] sm:$0xf]
  %v66 = vld [vmem:[%s0 + $0x64] sm:$0xf]
  %v67 = vld [vmem:[%s0 + $0x68] sm:$0xf]
  %v68 = vld [vmem:[%s0 + $0x6c] sm:$0xf]
  %v69 = vld [vmem:[%s0 + $0x70] sm:$0xf]
  %v70 = vld [vmem:[%s0 + $0x74] sm:$0xf]
  %v71 = vld [vmem:[%s0 + $0x78] sm:$0xf]
  %v72 = vld [vmem:[%s0 + $0x7c] sm:$0xf]
  %v73 = vld [vmem:[%s1] sm:$0xf]
  %v74 = vld [vmem:[%s1 + $0x4] sm:$0xf]
  %v75 = vld [vmem:[%s1 + $0x8] sm:$0xf]
  %v76 = vld [vmem:[%s1 + $0xc] sm:$0xf]
  %v77 = vld [vmem:[%s2] sm:$0x1]
  %v79 = vlaneseq
  %v80 = vshrl.u32 %v79, 7
  %v81 = vsub.s32 0, %v80
  %v82 = vrot.slane %v77, %v81
  %v116 = vunpack.c.l.b16 %v41
  %v117 = vunpack.c.l.b16 %v42
  %v118 = vunpack.c.l.b16 %v43
  %v119 = vunpack.c.l.b16 %v44
  %v120 = vunpack.c.l.b16 %v45
  %v121 = vunpack.c.l.b16 %v46
  %v122 = vunpack.c.l.b16 %v47
  %v123 = vunpack.c.l.b16 %v48
  %v124 = vunpack.c.l.b16 %v49
  %v125 = vunpack.c.l.b16 %v50
  %v126 = vunpack.c.l.b16 %v51
  %v127 = vunpack.c.l.b16 %v52
  %v128 = vunpack.c.l.b16 %v53
  %v129 = vunpack.c.l.b16 %v54
  %v130 = vunpack.c.l.b16 %v55
  %v131 = vunpack.c.l.b16 %v56
  %v132 = vunpack.c.l.b16 %v57
  %v133 = vunpack.c.l.b16 %v58
  %v134 = vunpack.c.l.b16 %v59
  %v135 = vunpack.c.l.b16 %v60
  %v136 = vunpack.c.l.b16 %v61
  %v137 = vunpack.c.l.b16 %v62
  %v138 = vunpack.c.l.b16 %v63
  %v139 = vunpack.c.l.b16 %v64
  %v140 = vunpack.c.l.b16 %v65
  %v141 = vunpack.c.l.b16 %v66
  %v142 = vunpack.c.l.b16 %v67
  %v143 = vunpack.c.l.b16 %v68
  %v144 = vunpack.c.l.b16 %v69
  %v145 = vunpack.c.l.b16 %v70
  %v146 = vunpack.c.l.b16 %v71
  %v147 = vunpack.c.l.b16 %v72
  %v148 = vpack.c.b16 %v117, %v116
  %v149 = vpack.c.b16 %v119, %v118
  %v150 = vpack.c.b16 %v121, %v120
  %v151 = vpack.c.b16 %v123, %v122
  %v152 = vpack.c.b16 %v125, %v124
  %v153 = vpack.c.b16 %v127, %v126
  %v154 = vpack.c.b16 %v129, %v128
  %v155 = vpack.c.b16 %v131, %v130
  %v156 = vpack.c.b16 %v133, %v132
  %v157 = vpack.c.b16 %v135, %v134
  %v158 = vpack.c.b16 %v137, %v136
  %v159 = vpack.c.b16 %v139, %v138
  %v160 = vpack.c.b16 %v141, %v140
  %v161 = vpack.c.b16 %v143, %v142
  %v162 = vpack.c.b16 %v145, %v144
  %v163 = vpack.c.b16 %v147, %v146
  %v168 = vunpack.c.l.b16 %v73
  %v169 = vunpack.c.l.b16 %v74
  %v170 = vunpack.c.l.b16 %v75
  %v171 = vunpack.c.l.b16 %v76
  %v172 = vpack.c.b16 %v169, %v168
  %v173 = vpack.c.b16 %v171, %v170
  %vm176 = vcmask 261120
  %v178 = vsel %vm176, %v148, 0
  %v181 = vsel %vm176, %v149, 0
  %v184 = vsel %vm176, %v150, 0
  %v187 = vsel %vm176, %v151, 0
  %v190 = vsel %vm176, %v152, 0
  %v193 = vsel %vm176, %v153, 0
  %v196 = vsel %vm176, %v154, 0
  %v199 = vsel %vm176, %v155, 0
  %v202 = vsel %vm176, %v156, 0
  %v205 = vsel %vm176, %v157, 0
  %v208 = vsel %vm176, %v158, 0
  %v211 = vsel %vm176, %v159, 0
  %v214 = vsel %vm176, %v160, 0
  %v217 = vsel %vm176, %v161, 0
  %v220 = vsel %vm176, %v162, 0
  %v223 = vsel %vm176, %v163, 0
  %225 = vmatprep.subr.bf16.mxu0 0
  %226 = vmatpush1.bf16.msra.mxu0 %v172
  %227 = vmatprep.subr.bf16.mxu0 0
  %228 = vmatpush1.bf16.msra.mxu0 %v173
  %229 = vmatprep.subr.bf16.mxu0 0
  %230 = vmatpush1.bf16.msra.mxu0 0
  %231 = vmatprep.subr.bf16.mxu0 0
  %232 = vmatpush1.bf16.msra.mxu0 0
  %233 = vmatprep.subr.bf16.mxu0 0
  %234 = vmatpush1.bf16.msra.mxu0 0
  %235 = vmatprep.subr.bf16.mxu0 0
  %236 = vmatpush1.bf16.msra.mxu0 0
  %237 = vmatprep.subr.bf16.mxu0 0
  %238 = vmatpush1.bf16.msra.mxu0 0
  %239 = vmatprep.subr.bf16.mxu0 0
  %240 = vmatpush1.bf16.msra.mxu0 0
  %241 = vmatprep.subr.bf16.mxu0 0
  %242 = vmatpush1.bf16.msra.mxu0 0
  %243 = vmatprep.subr.bf16.mxu0 0
  %244 = vmatpush1.bf16.msra.mxu0 0
  %245 = vmatprep.subr.bf16.mxu0 0
  %246 = vmatpush1.bf16.msra.mxu0 0
  %247 = vmatprep.subr.bf16.mxu0 0
  %248 = vmatpush1.bf16.msra.mxu0 0
  %249 = vmatprep.subr.bf16.mxu0 0
  %250 = vmatpush1.bf16.msra.mxu0 0
  %251 = vmatprep.subr.bf16.mxu0 0
  %252 = vmatpush1.bf16.msra.mxu0 0
  %253 = vmatprep.subr.bf16.mxu0 0
  %254 = vmatpush1.bf16.msra.mxu0 0
  %255 = vmatprep.subr.bf16.mxu0 0
  %256 = vmatpush1.bf16.msra.mxu0 0
  %257 = vmatprep.mubr.bf16.mxu0 0
  %258 = vmatmul.mubr.bf16.gmra.mrb[0].mxu0 %v178
  %v259 = vpop.f32.mrb[0].mxu0
  %v260 = vadd.f32 %v82, %v259
  %v261 = vpop.f32.mrb[0].mxu0
  %v262 = vpop.f32.mrb[0].mxu0
  %v263 = vadd.f32 %v82, %v262
  %v264 = vpop.f32.mrb[0].mxu0
  %265 = vmatprep.mubr.bf16.mxu0 0
  %266 = vmatmul.mubr.bf16.gmra.mrb[0].mxu0 %v181
  %v267 = vpop.f32.mrb[0].mxu0
  %v268 = vadd.f32 %v82, %v267
  %v269 = vpop.f32.mrb[0].mxu0
  %v270 = vpop.f32.mrb[0].mxu0
  %v271 = vadd.f32 %v82, %v270
  %v272 = vpop.f32.mrb[0].mxu0
  %273 = vmatprep.mubr.bf16.mxu0 0
  %274 = vmatmul.mubr.bf16.gmra.mrb[0].mxu0 %v184
  %v275 = vpop.f32.mrb[0].mxu0
  %v276 = vadd.f32 %v82, %v275
  %v277 = vpop.f32.mrb[0].mxu0
  %v278 = vpop.f32.mrb[0].mxu0
  %v279 = vadd.f32 %v82, %v278
  %v280 = vpop.f32.mrb[0].mxu0
  %281 = vmatprep.mubr.bf16.mxu0 0
  %282 = vmatmul.mubr.bf16.gmra.mrb[0].mxu0 %v187
  %v283 = vpop.f32.mrb[0].mxu0
  %v284 = vadd.f32 %v82, %v283
  %v285 = vpop.f32.mrb[0].mxu0
  %v286 = vpop.f32.mrb[0].mxu0
  %v287 = vadd.f32 %v82, %v286
  %v288 = vpop.f32.mrb[0].mxu0
  %289 = vmatprep.mubr.bf16.mxu0 0
  %290 = vmatmul.mubr.bf16.gmra.mrb[0].mxu0 %v190
  %v291 = vpop.f32.mrb[0].mxu0
  %v292 = vadd.f32 %v82, %v291
  %v293 = vpop.f32.mrb[0].mxu0
  %v294 = vpop.f32.mrb[0].mxu0
  %v295 = vadd.f32 %v82, %v294
  %v296 = vpop.f32.mrb[0].mxu0
  %297 = vmatprep.mubr.bf16.mxu0 0
  %298 = vmatmul.mubr.bf16.gmra.mrb[0].mxu0 %v193
  %v299 = vpop.f32.mrb[0].mxu0
  %v300 = vadd.f32 %v82, %v299
  %v301 = vpop.f32.mrb[0].mxu0
  %v302 = vpop.f32.mrb[0].mxu0
  %v303 = vadd.f32 %v82, %v302
  %v304 = vpop.f32.mrb[0].mxu0
  %305 = vmatprep.mubr.bf16.mxu0 0
  %306 = vmatmul.mubr.bf16.gmra.mrb[0].mxu0 %v196
  %v307 = vpop.f32.mrb[0].mxu0
  %v308 = vadd.f32 %v82, %v307
  %v309 = vpop.f32.mrb[0].mxu0
  %v310 = vpop.f32.mrb[0].mxu0
  %v311 = vadd.f32 %v82, %v310
  %v312 = vpop.f32.mrb[0].mxu0
  %313 = vmatprep.mubr.bf16.mxu0 0
  %314 = vmatmul.mubr.bf16.gmra.mrb[0].mxu0 %v199
  %v315 = vpop.f32.mrb[0].mxu0
  %v316 = vadd.f32 %v82, %v315
  %v317 = vpop.f32.mrb[0].mxu0
  %v318 = vpop.f32.mrb[0].mxu0
  %v319 = vadd.f32 %v82, %v318
  %v320 = vpop.f32.mrb[0].mxu0
  %321 = vmatprep.mubr.bf16.mxu0 0
  %322 = vmatmul.mubr.bf16.gmra.mrb[0].mxu0 %v202
  %v323 = vpop.f32.mrb[0].mxu0
  %v324 = vadd.f32 %v82, %v323
  %v325 = vpop.f32.mrb[0].mxu0
  %v326 = vpop.f32.mrb[0].mxu0
  %v327 = vadd.f32 %v82, %v326
  %v328 = vpop.f32.mrb[0].mxu0
  %329 = vmatprep.mubr.bf16.mxu0 0
  %330 = vmatmul.mubr.bf16.gmra.mrb[0].mxu0 %v205
  %v331 = vpop.f32.mrb[0].mxu0
  %v332 = vadd.f32 %v82, %v331
  %v333 = vpop.f32.mrb[0].mxu0
  %v334 = vpop.f32.mrb[0].mxu0
  %v335 = vadd.f32 %v82, %v334
  %v336 = vpop.f32.mrb[0].mxu0
  %337 = vmatprep.mubr.bf16.mxu0 0
  %338 = vmatmul.mubr.bf16.gmra.mrb[0].mxu0 %v208
  %v339 = vpop.f32.mrb[0].mxu0
  %v340 = vadd.f32 %v82, %v339
  %v341 = vpop.f32.mrb[0].mxu0
  %v342 = vpop.f32.mrb[0].mxu0
  %v343 = vadd.f32 %v82, %v342
  %v344 = vpop.f32.mrb[0].mxu0
  %345 = vmatprep.mubr.bf16.mxu0 0
  %346 = vmatmul.mubr.bf16.gmra.mrb[0].mxu0 %v211
  %v347 = vpop.f32.mrb[0].mxu0
  %v348 = vadd.f32 %v82, %v347
  %v349 = vpop.f32.mrb[0].mxu0
  %v350 = vpop.f32.mrb[0].mxu0
  %v351 = vadd.f32 %v82, %v350
  %v352 = vpop.f32.mrb[0].mxu0
  %353 = vmatprep.mubr.bf16.mxu0 0
  %354 = vmatmul.mubr.bf16.gmra.mrb[0].mxu0 %v214
  %v355 = vpop.f32.mrb[0].mxu0
  %v356 = vadd.f32 %v82, %v355
  %v357 = vpop.f32.mrb[0].mxu0
  %v358 = vpop.f32.mrb[0].mxu0
  %v359 = vadd.f32 %v82, %v358
  %v360 = vpop.f32.mrb[0].mxu0
  %361 = vmatprep.mubr.bf16.mxu0 0
  %362 = vmatmul.mubr.bf16.gmra.mrb[0].mxu0 %v217
  %v363 = vpop.f32.mrb[0].mxu0
  %v364 = vadd.f32 %v82, %v363
  %v365 = vpop.f32.mrb[0].mxu0
  %v366 = vpop.f32.mrb[0].mxu0
  %v367 = vadd.f32 %v82, %v366
  %v368 = vpop.f32.mrb[0].mxu0
  %369 = vmatprep.mubr.bf16.mxu0 0
  %370 = vmatmul.mubr.bf16.gmra.mrb[0].mxu0 %v220
  %v371 = vpop.f32.mrb[0].mxu0
  %v372 = vadd.f32 %v82, %v371
  %v373 = vpop.f32.mrb[0].mxu0
  %v374 = vpop.f32.mrb[0].mxu0
  %v375 = vadd.f32 %v82, %v374
  %v376 = vpop.f32.mrb[0].mxu0
  %377 = vmatprep.mubr.bf16.mxu0 0
  %378 = vmatmul.mubr.bf16.gmra.mrb[0].mxu0 %v223
  %v379 = vpop.f32.mrb[0].mxu0
  %v380 = vadd.f32 %v82, %v379
  %v381 = vpop.f32.mrb[0].mxu0
  %v382 = vpop.f32.mrb[0].mxu0
  %v383 = vadd.f32 %v82, %v382
  %v384 = vpop.f32.mrb[0].mxu0
  %385 = vdwg.mxu0
  %vm386 = vcmp.gt.f32.partialorder %v260, 0.0
  %vm387 = vcmp.gt.f32.partialorder %v263, 0.0
  %vm388 = vcmp.gt.f32.partialorder %v268, 0.0
  %vm389 = vcmp.gt.f32.partialorder %v271, 0.0
  %vm390 = vcmp.gt.f32.partialorder %v276, 0.0
  %vm391 = vcmp.gt.f32.partialorder %v279, 0.0
  %vm392 = vcmp.gt.f32.partialorder %v284, 0.0
  %vm393 = vcmp.gt.f32.partialorder %v287, 0.0
  %vm394 = vcmp.gt.f32.partialorder %v292, 0.0
  %vm395 = vcmp.gt.f32.partialorder %v295, 0.0
  %vm396 = vcmp.gt.f32.partialorder %v300, 0.0
  %vm397 = vcmp.gt.f32.partialorder %v303, 0.0
  %vm398 = vcmp.gt.f32.partialorder %v308, 0.0
  %vm399 = vcmp.gt.f32.partialorder %v311, 0.0
  %vm400 = vcmp.gt.f32.partialorder %v316, 0.0
  %vm401 = vcmp.gt.f32.partialorder %v319, 0.0
  %vm402 = vcmp.gt.f32.partialorder %v324, 0.0
  %vm403 = vcmp.gt.f32.partialorder %v327, 0.0
  %vm404 = vcmp.gt.f32.partialorder %v332, 0.0
  %vm405 = vcmp.gt.f32.partialorder %v335, 0.0
  %vm406 = vcmp.gt.f32.partialorder %v340, 0.0
  %vm407 = vcmp.gt.f32.partialorder %v343, 0.0
  %vm408 = vcmp.gt.f32.partialorder %v348, 0.0
  %vm409 = vcmp.gt.f32.partialorder %v351, 0.0
  %vm410 = vcmp.gt.f32.partialorder %v356, 0.0
  %vm411 = vcmp.gt.f32.partialorder %v359, 0.0
  %vm412 = vcmp.gt.f32.partialorder %v364, 0.0
  %vm413 = vcmp.gt.f32.partialorder %v367, 0.0
  %vm414 = vcmp.gt.f32.partialorder %v372, 0.0
  %vm415 = vcmp.gt.f32.partialorder %v375, 0.0
  %vm416 = vcmp.gt.f32.partialorder %v380, 0.0
  %vm417 = vcmp.gt.f32.partialorder %v383, 0.0
  %v418 = vmul.f32 %v260, 0.01
  %v419 = vmul.f32 %v263, 0.01
  %v420 = vmul.f32 %v268, 0.01
  %v421 = vmul.f32 %v271, 0.01
  %v422 = vmul.f32 %v276, 0.01
  %v423 = vmul.f32 %v279, 0.01
  %v424 = vmul.f32 %v284, 0.01
  %v425 = vmul.f32 %v287, 0.01
  %v426 = vmul.f32 %v292, 0.01
  %v427 = vmul.f32 %v295, 0.01
  %v428 = vmul.f32 %v300, 0.01
  %v429 = vmul.f32 %v303, 0.01
  %v430 = vmul.f32 %v308, 0.01
  %v431 = vmul.f32 %v311, 0.01
  %v432 = vmul.f32 %v316, 0.01
  %v433 = vmul.f32 %v319, 0.01
  %v434 = vmul.f32 %v324, 0.01
  %v435 = vmul.f32 %v327, 0.01
  %v436 = vmul.f32 %v332, 0.01
  %v437 = vmul.f32 %v335, 0.01
  %v438 = vmul.f32 %v340, 0.01
  %v439 = vmul.f32 %v343, 0.01
  %v440 = vmul.f32 %v348, 0.01
  %v441 = vmul.f32 %v351, 0.01
  %v442 = vmul.f32 %v356, 0.01
  %v443 = vmul.f32 %v359, 0.01
  %v444 = vmul.f32 %v364, 0.01
  %v445 = vmul.f32 %v367, 0.01
  %v446 = vmul.f32 %v372, 0.01
  %v447 = vmul.f32 %v375, 0.01
  %v448 = vmul.f32 %v380, 0.01
  %v449 = vmul.f32 %v383, 0.01
  %v450 = vsel %vm386, %v260, %v418
  %v451 = vsel %vm387, %v263, %v419
  %v452 = vsel %vm388, %v268, %v420
  %v453 = vsel %vm389, %v271, %v421
  %v454 = vsel %vm390, %v276, %v422
  %v455 = vsel %vm391, %v279, %v423
  %v456 = vsel %vm392, %v284, %v424
  %v457 = vsel %vm393, %v287, %v425
  %v458 = vsel %vm394, %v292, %v426
  %v459 = vsel %vm395, %v295, %v427
  %v460 = vsel %vm396, %v300, %v428
  %v461 = vsel %vm397, %v303, %v429
  %v462 = vsel %vm398, %v308, %v430
  %v463 = vsel %vm399, %v311, %v431
  %v464 = vsel %vm400, %v316, %v432
  %v465 = vsel %vm401, %v319, %v433
  %v466 = vsel %vm402, %v324, %v434
  %v467 = vsel %vm403, %v327, %v435
  %v468 = vsel %vm404, %v332, %v436
  %v469 = vsel %vm405, %v335, %v437
  %v470 = vsel %vm406, %v340, %v438
  %v471 = vsel %vm407, %v343, %v439
  %v472 = vsel %vm408, %v348, %v440
  %v473 = vsel %vm409, %v351, %v441
  %v474 = vsel %vm410, %v356, %v442
  %v475 = vsel %vm411, %v359, %v443
  %v476 = vsel %vm412, %v364, %v444
  %v477 = vsel %vm413, %v367, %v445
  %v478 = vsel %vm414, %v372, %v446
  %v479 = vsel %vm415, %v375, %v447
  %v480 = vsel %vm416, %v380, %v448
  %v481 = vsel %vm417, %v383, %v449
  %v482 = vpack.c.bf16 %v451, %v450
  %v483 = vpack.c.bf16 %v453, %v452
  %v484 = vpack.c.bf16 %v455, %v454
  %v485 = vpack.c.bf16 %v457, %v456
  %v486 = vpack.c.bf16 %v459, %v458
  %v487 = vpack.c.bf16 %v461, %v460
  %v488 = vpack.c.bf16 %v463, %v462
  %v489 = vpack.c.bf16 %v465, %v464
  %v490 = vpack.c.bf16 %v467, %v466
  %v491 = vpack.c.bf16 %v469, %v468
  %v492 = vpack.c.bf16 %v471, %v470
  %v493 = vpack.c.bf16 %v473, %v472
  %v494 = vpack.c.bf16 %v475, %v474
  %v495 = vpack.c.bf16 %v477, %v476
  %v496 = vpack.c.bf16 %v479, %v478
  %v497 = vpack.c.bf16 %v481, %v480
  %v498 = vld [vmem:[%s3] sm:$0xf]
  %v499 = vld [vmem:[%s3 + $0x4] sm:$0xf]
  %v500 = vld [vmem:[%s3 + $0x8] sm:$0xf]
  %v501 = vld [vmem:[%s3 + $0xc] sm:$0xf]
  %v502 = vld [vmem:[%s3 + $0x10] sm:$0xf]
  %v503 = vld [vmem:[%s3 + $0x14] sm:$0xf]
  %v504 = vld [vmem:[%s3 + $0x18] sm:$0xf]
  %v505 = vld [vmem:[%s3 + $0x1c] sm:$0xf]
  %v506 = vld [vmem:[%s3 + $0x20] sm:$0xf]
  %v507 = vld [vmem:[%s3 + $0x24] sm:$0xf]
  %v508 = vld [vmem:[%s3 + $0x28] sm:$0xf]
  %v509 = vld [vmem:[%s3 + $0x2c] sm:$0xf]
  %v510 = vld [vmem:[%s3 + $0x30] sm:$0xf]
  %v511 = vld [vmem:[%s3 + $0x34] sm:$0xf]
  %v512 = vld [vmem:[%s3 + $0x38] sm:$0xf]
  %v513 = vld [vmem:[%s3 + $0x3c] sm:$0xf]
  %v514 = vld [vmem:[%s4] sm:$0x1]
  %v516 = vlaneseq
  %v517 = vshrl.u32 %v516, 7
  %v518 = vsub.s32 0, %v517
  %v519 = vrot.slane %v514, %v518
  %v537 = vunpack.c.l.b16 %v498
  %v538 = vunpack.c.l.b16 %v499
  %v539 = vunpack.c.l.b16 %v500
  %v540 = vunpack.c.l.b16 %v501
  %v541 = vunpack.c.l.b16 %v502
  %v542 = vunpack.c.l.b16 %v503
  %v543 = vunpack.c.l.b16 %v504
  %v544 = vunpack.c.l.b16 %v505
  %v545 = vunpack.c.l.b16 %v506
  %v546 = vunpack.c.l.b16 %v507
  %v547 = vunpack.c.l.b16 %v508
  %v548 = vunpack.c.l.b16 %v509
  %v549 = vunpack.c.l.b16 %v510
  %v550 = vunpack.c.l.b16 %v511
  %v551 = vunpack.c.l.b16 %v512
  %v552 = vunpack.c.l.b16 %v513
  %v553 = vpack.c.b16 %v538, %v537
  %v554 = vpack.c.b16 %v540, %v539
  %v555 = vpack.c.b16 %v542, %v541
  %v556 = vpack.c.b16 %v544, %v543
  %v557 = vpack.c.b16 %v546, %v545
  %v558 = vpack.c.b16 %v548, %v547
  %v559 = vpack.c.b16 %v550, %v549
  %v560 = vpack.c.b16 %v552, %v551
  %569 = vmatprep.subr.bf16.mxu0 0
  %570 = vmatpush1.bf16.msra.mxu0 %v553
  %571 = vmatprep.subr.bf16.mxu0 0
  %572 = vmatpush1.bf16.msra.mxu0 %v554
  %573 = vmatprep.subr.bf16.mxu0 0
  %574 = vmatpush1.bf16.msra.mxu0 %v555
  %575 = vmatprep.subr.bf16.mxu0 0
  %576 = vmatpush1.bf16.msra.mxu0 %v556
  %577 = vmatprep.subr.bf16.mxu0 0
  %578 = vmatpush1.bf16.msra.mxu0 %v557
  %579 = vmatprep.subr.bf16.mxu0 0
  %580 = vmatpush1.bf16.msra.mxu0 %v558
  %581 = vmatprep.subr.bf16.mxu0 0
  %582 = vmatpush1.bf16.msra.mxu0 %v559
  %583 = vmatprep.subr.bf16.mxu0 0
  %584 = vmatpush1.bf16.msra.mxu0 %v560
  %585 = vmatprep.subr.bf16.mxu0 0
  %586 = vmatpush1.bf16.msra.mxu0 0
  %587 = vmatprep.subr.bf16.mxu0 0
  %588 = vmatpush1.bf16.msra.mxu0 0
  %589 = vmatprep.subr.bf16.mxu0 0
  %590 = vmatpush1.bf16.msra.mxu0 0
  %591 = vmatprep.subr.bf16.mxu0 0
  %592 = vmatpush1.bf16.msra.mxu0 0
  %593 = vmatprep.subr.bf16.mxu0 0
  %594 = vmatpush1.bf16.msra.mxu0 0
  %595 = vmatprep.subr.bf16.mxu0 0
  %596 = vmatpush1.bf16.msra.mxu0 0
  %597 = vmatprep.subr.bf16.mxu0 0
  %598 = vmatpush1.bf16.msra.mxu0 0
  %599 = vmatprep.subr.bf16.mxu0 0
  %600 = vmatpush1.bf16.msra.mxu0 0
  %601 = vmatprep.mubr.bf16.mxu0 0
  %602 = vmatmul.mubr.bf16.gmra.mrb[0].mxu0 %v482
  %v603 = vpop.f32.mrb[0].mxu0
  %v604 = vadd.f32 %v519, %v603
  %v605 = vpop.f32.mrb[0].mxu0
  %v606 = vpop.f32.mrb[0].mxu0
  %v607 = vadd.f32 %v519, %v606
  %v608 = vpop.f32.mrb[0].mxu0
  %609 = vmatprep.mubr.bf16.mxu0 0
  %610 = vmatmul.mubr.bf16.gmra.mrb[0].mxu0 %v483
  %v611 = vpop.f32.mrb[0].mxu0
  %v612 = vadd.f32 %v519, %v611
  %v613 = vpop.f32.mrb[0].mxu0
  %v614 = vpop.f32.mrb[0].mxu0
  %v615 = vadd.f32 %v519, %v614
  %v616 = vpop.f32.mrb[0].mxu0
  %617 = vmatprep.mubr.bf16.mxu0 0
  %618 = vmatmul.mubr.bf16.gmra.mrb[0].mxu0 %v484
  %v619 = vpop.f32.mrb[0].mxu0
  %v620 = vadd.f32 %v519, %v619
  %v621 = vpop.f32.mrb[0].mxu0
  %v622 = vpop.f32.mrb[0].mxu0
  %v623 = vadd.f32 %v519, %v622
  %v624 = vpop.f32.mrb[0].mxu0
  %625 = vmatprep.mubr.bf16.mxu0 0
  %626 = vmatmul.mubr.bf16.gmra.mrb[0].mxu0 %v485
  %v627 = vpop.f32.mrb[0].mxu0
  %v628 = vadd.f32 %v519, %v627
  %v629 = vpop.f32.mrb[0].mxu0
  %v630 = vpop.f32.mrb[0].mxu0
  %v631 = vadd.f32 %v519, %v630
  %v632 = vpop.f32.mrb[0].mxu0
  %633 = vmatprep.mubr.bf16.mxu0 0
  %634 = vmatmul.mubr.bf16.gmra.mrb[0].mxu0 %v486
  %v635 = vpop.f32.mrb[0].mxu0
  %v636 = vadd.f32 %v519, %v635
  %v637 = vpop.f32.mrb[0].mxu0
  %v638 = vpop.f32.mrb[0].mxu0
  %v639 = vadd.f32 %v519, %v638
  %v640 = vpop.f32.mrb[0].mxu0
  %641 = vmatprep.mubr.bf16.mxu0 0
  %642 = vmatmul.mubr.bf16.gmra.mrb[0].mxu0 %v487
  %v643 = vpop.f32.mrb[0].mxu0
  %v644 = vadd.f32 %v519, %v643
  %v645 = vpop.f32.mrb[0].mxu0
  %v646 = vpop.f32.mrb[0].mxu0
  %v647 = vadd.f32 %v519, %v646
  %v648 = vpop.f32.mrb[0].mxu0
  %649 = vmatprep.mubr.bf16.mxu0 0
  %650 = vmatmul.mubr.bf16.gmra.mrb[0].mxu0 %v488
  %v651 = vpop.f32.mrb[0].mxu0
  %v652 = vadd.f32 %v519, %v651
  %v653 = vpop.f32.mrb[0].mxu0
  %v654 = vpop.f32.mrb[0].mxu0
  %v655 = vadd.f32 %v519, %v654
  %v656 = vpop.f32.mrb[0].mxu0
  %657 = vmatprep.mubr.bf16.mxu0 0
  %658 = vmatmul.mubr.bf16.gmra.mrb[0].mxu0 %v489
  %v659 = vpop.f32.mrb[0].mxu0
  %v660 = vadd.f32 %v519, %v659
  %v661 = vpop.f32.mrb[0].mxu0
  %v662 = vpop.f32.mrb[0].mxu0
  %v663 = vadd.f32 %v519, %v662
  %v664 = vpop.f32.mrb[0].mxu0
  %665 = vmatprep.mubr.bf16.mxu0 0
  %666 = vmatmul.mubr.bf16.gmra.mrb[0].mxu0 %v490
  %v667 = vpop.f32.mrb[0].mxu0
  %v668 = vadd.f32 %v519, %v667
  %v669 = vpop.f32.mrb[0].mxu0
  %v670 = vpop.f32.mrb[0].mxu0
  %v671 = vadd.f32 %v519, %v670
  %v672 = vpop.f32.mrb[0].mxu0
  %673 = vmatprep.mubr.bf16.mxu0 0
  %674 = vmatmul.mubr.bf16.gmra.mrb[0].mxu0 %v491
  %v675 = vpop.f32.mrb[0].mxu0
  %v676 = vadd.f32 %v519, %v675
  %v677 = vpop.f32.mrb[0].mxu0
  %v678 = vpop.f32.mrb[0].mxu0
  %v679 = vadd.f32 %v519, %v678
  %v680 = vpop.f32.mrb[0].mxu0
  %681 = vmatprep.mubr.bf16.mxu0 0
  %682 = vmatmul.mubr.bf16.gmra.mrb[0].mxu0 %v492
  %v683 = vpop.f32.mrb[0].mxu0
  %v684 = vadd.f32 %v519, %v683
  %v685 = vpop.f32.mrb[0].mxu0
  %v686 = vpop.f32.mrb[0].mxu0
  %v687 = vadd.f32 %v519, %v686
  %v688 = vpop.f32.mrb[0].mxu0
  %689 = vmatprep.mubr.bf16.mxu0 0
  %690 = vmatmul.mubr.bf16.gmra.mrb[0].mxu0 %v493
  %v691 = vpop.f32.mrb[0].mxu0
  %v692 = vadd.f32 %v519, %v691
  %v693 = vpop.f32.mrb[0].mxu0
  %v694 = vpop.f32.mrb[0].mxu0
  %v695 = vadd.f32 %v519, %v694
  %v696 = vpop.f32.mrb[0].mxu0
  %697 = vmatprep.mubr.bf16.mxu0 0
  %698 = vmatmul.mubr.bf16.gmra.mrb[0].mxu0 %v494
  %v699 = vpop.f32.mrb[0].mxu0
  %v700 = vadd.f32 %v519, %v699
  %v701 = vpop.f32.mrb[0].mxu0
  %v702 = vpop.f32.mrb[0].mxu0
  %v703 = vadd.f32 %v519, %v702
  %v704 = vpop.f32.mrb[0].mxu0
  %705 = vmatprep.mubr.bf16.mxu0 0
  %706 = vmatmul.mubr.bf16.gmra.mrb[0].mxu0 %v495
  %v707 = vpop.f32.mrb[0].mxu0
  %v708 = vadd.f32 %v519, %v707
  %v709 = vpop.f32.mrb[0].mxu0
  %v710 = vpop.f32.mrb[0].mxu0
  %v711 = vadd.f32 %v519, %v710
  %v712 = vpop.f32.mrb[0].mxu0
  %713 = vmatprep.mubr.bf16.mxu0 0
  %714 = vmatmul.mubr.bf16.gmra.mrb[0].mxu0 %v496
  %v715 = vpop.f32.mrb[0].mxu0
  %v716 = vadd.f32 %v519, %v715
  %v717 = vpop.f32.mrb[0].mxu0
  %v718 = vpop.f32.mrb[0].mxu0
  %v719 = vadd.f32 %v519, %v718
  %v720 = vpop.f32.mrb[0].mxu0
  %721 = vmatprep.mubr.bf16.mxu0 0
  %722 = vmatmul.mubr.bf16.gmra.mrb[0].mxu0 %v497
  %v723 = vpop.f32.mrb[0].mxu0
  %v724 = vadd.f32 %v519, %v723
  %v725 = vpop.f32.mrb[0].mxu0
  %v726 = vpop.f32.mrb[0].mxu0
  %v727 = vadd.f32 %v519, %v726
  %v728 = vpop.f32.mrb[0].mxu0
  %729 = vdwg.mxu0
  %vm730 = vcmp.gt.f32.partialorder %v604, 0.0
  %vm731 = vcmp.gt.f32.partialorder %v607, 0.0
  %vm732 = vcmp.gt.f32.partialorder %v612, 0.0
  %vm733 = vcmp.gt.f32.partialorder %v615, 0.0
  %vm734 = vcmp.gt.f32.partialorder %v620, 0.0
  %vm735 = vcmp.gt.f32.partialorder %v623, 0.0
  %vm736 = vcmp.gt.f32.partialorder %v628, 0.0
  %vm737 = vcmp.gt.f32.partialorder %v631, 0.0
  %vm738 = vcmp.gt.f32.partialorder %v636, 0.0
  %vm739 = vcmp.gt.f32.partialorder %v639, 0.0
  %vm740 = vcmp.gt.f32.partialorder %v644, 0.0
  %vm741 = vcmp.gt.f32.partialorder %v647, 0.0
  %vm742 = vcmp.gt.f32.partialorder %v652, 0.0
  %vm743 = vcmp.gt.f32.partialorder %v655, 0.0
  %vm744 = vcmp.gt.f32.partialorder %v660, 0.0
  %vm745 = vcmp.gt.f32.partialorder %v663, 0.0
  %vm746 = vcmp.gt.f32.partialorder %v668, 0.0
  %vm747 = vcmp.gt.f32.partialorder %v671, 0.0
  %vm748 = vcmp.gt.f32.partialorder %v676, 0.0
  %vm749 = vcmp.gt.f32.partialorder %v679, 0.0
  %vm750 = vcmp.gt.f32.partialorder %v684, 0.0
  %vm751 = vcmp.gt.f32.partialorder %v687, 0.0
  %vm752 = vcmp.gt.f32.partialorder %v692, 0.0
  %vm753 = vcmp.gt.f32.partialorder %v695, 0.0
  %vm754 = vcmp.gt.f32.partialorder %v700, 0.0
  %vm755 = vcmp.gt.f32.partialorder %v703, 0.0
  %vm756 = vcmp.gt.f32.partialorder %v708, 0.0
  %vm757 = vcmp.gt.f32.partialorder %v711, 0.0
  %vm758 = vcmp.gt.f32.partialorder %v716, 0.0
  %vm759 = vcmp.gt.f32.partialorder %v719, 0.0
  %vm760 = vcmp.gt.f32.partialorder %v724, 0.0
  %vm761 = vcmp.gt.f32.partialorder %v727, 0.0
  %v762 = vmul.f32 %v604, 0.01
  %v763 = vmul.f32 %v607, 0.01
  %v764 = vmul.f32 %v612, 0.01
  %v765 = vmul.f32 %v615, 0.01
  %v766 = vmul.f32 %v620, 0.01
  %v767 = vmul.f32 %v623, 0.01
  %v768 = vmul.f32 %v628, 0.01
  %v769 = vmul.f32 %v631, 0.01
  %v770 = vmul.f32 %v636, 0.01
  %v771 = vmul.f32 %v639, 0.01
  %v772 = vmul.f32 %v644, 0.01
  %v773 = vmul.f32 %v647, 0.01
  %v774 = vmul.f32 %v652, 0.01
  %v775 = vmul.f32 %v655, 0.01
  %v776 = vmul.f32 %v660, 0.01
  %v777 = vmul.f32 %v663, 0.01
  %v778 = vmul.f32 %v668, 0.01
  %v779 = vmul.f32 %v671, 0.01
  %v780 = vmul.f32 %v676, 0.01
  %v781 = vmul.f32 %v679, 0.01
  %v782 = vmul.f32 %v684, 0.01
  %v783 = vmul.f32 %v687, 0.01
  %v784 = vmul.f32 %v692, 0.01
  %v785 = vmul.f32 %v695, 0.01
  %v786 = vmul.f32 %v700, 0.01
  %v787 = vmul.f32 %v703, 0.01
  %v788 = vmul.f32 %v708, 0.01
  %v789 = vmul.f32 %v711, 0.01
  %v790 = vmul.f32 %v716, 0.01
  %v791 = vmul.f32 %v719, 0.01
  %v792 = vmul.f32 %v724, 0.01
  %v793 = vmul.f32 %v727, 0.01
  %v794 = vsel %vm730, %v604, %v762
  %v795 = vsel %vm731, %v607, %v763
  %v796 = vsel %vm732, %v612, %v764
  %v797 = vsel %vm733, %v615, %v765
  %v798 = vsel %vm734, %v620, %v766
  %v799 = vsel %vm735, %v623, %v767
  %v800 = vsel %vm736, %v628, %v768
  %v801 = vsel %vm737, %v631, %v769
  %v802 = vsel %vm738, %v636, %v770
  %v803 = vsel %vm739, %v639, %v771
  %v804 = vsel %vm740, %v644, %v772
  %v805 = vsel %vm741, %v647, %v773
  %v806 = vsel %vm742, %v652, %v774
  %v807 = vsel %vm743, %v655, %v775
  %v808 = vsel %vm744, %v660, %v776
  %v809 = vsel %vm745, %v663, %v777
  %v810 = vsel %vm746, %v668, %v778
  %v811 = vsel %vm747, %v671, %v779
  %v812 = vsel %vm748, %v676, %v780
  %v813 = vsel %vm749, %v679, %v781
  %v814 = vsel %vm750, %v684, %v782
  %v815 = vsel %vm751, %v687, %v783
  %v816 = vsel %vm752, %v692, %v784
  %v817 = vsel %vm753, %v695, %v785
  %v818 = vsel %vm754, %v700, %v786
  %v819 = vsel %vm755, %v703, %v787
  %v820 = vsel %vm756, %v708, %v788
  %v821 = vsel %vm757, %v711, %v789
  %v822 = vsel %vm758, %v716, %v790
  %v823 = vsel %vm759, %v719, %v791
  %v824 = vsel %vm760, %v724, %v792
  %v825 = vsel %vm761, %v727, %v793
  %v826 = vpack.c.bf16 %v795, %v794
  %v827 = vpack.c.bf16 %v797, %v796
  %v828 = vpack.c.bf16 %v799, %v798
  %v829 = vpack.c.bf16 %v801, %v800
  %v830 = vpack.c.bf16 %v803, %v802
  %v831 = vpack.c.bf16 %v805, %v804
  %v832 = vpack.c.bf16 %v807, %v806
  %v833 = vpack.c.bf16 %v809, %v808
  %v834 = vpack.c.bf16 %v811, %v810
  %v835 = vpack.c.bf16 %v813, %v812
  %v836 = vpack.c.bf16 %v815, %v814
  %v837 = vpack.c.bf16 %v817, %v816
  %v838 = vpack.c.bf16 %v819, %v818
  %v839 = vpack.c.bf16 %v821, %v820
  %v840 = vpack.c.bf16 %v823, %v822
  %v841 = vpack.c.bf16 %v825, %v824
  %v842 = vld [vmem:[%s5] sm:$0xf]
  %v843 = vld [vmem:[%s5 + $0x4] sm:$0xf]
  %v844 = vld [vmem:[%s5 + $0x8] sm:$0xf]
  %v845 = vld [vmem:[%s5 + $0xc] sm:$0xf]
  %v846 = vld [vmem:[%s5 + $0x10] sm:$0xf]
  %v847 = vld [vmem:[%s5 + $0x14] sm:$0xf]
  %v848 = vld [vmem:[%s5 + $0x18] sm:$0xf]
  %v849 = vld [vmem:[%s5 + $0x1c] sm:$0xf]
  %v850 = vld [vmem:[%s6] sm:$0x1]
  %v852 = vlaneseq
  %v853 = vshrl.u32 %v852, 7
  %v854 = vsub.s32 0, %v853
  %v855 = vrot.slane %v850, %v854
  %v865 = vunpack.c.l.b16 %v842
  %v866 = vunpack.c.l.b16 %v843
  %v867 = vunpack.c.l.b16 %v844
  %v868 = vunpack.c.l.b16 %v845
  %v869 = vunpack.c.l.b16 %v846
  %v870 = vunpack.c.l.b16 %v847
  %v871 = vunpack.c.l.b16 %v848
  %v872 = vunpack.c.l.b16 %v849
  %v873 = vpack.c.b16 %v866, %v865
  %v874 = vpack.c.b16 %v868, %v867
  %v875 = vpack.c.b16 %v870, %v869
  %v876 = vpack.c.b16 %v872, %v871
  %vm881 = vcmask 523264
  %v883 = vsel %vm881, %v826, 0
  %v886 = vsel %vm881, %v827, 0
  %v889 = vsel %vm881, %v828, 0
  %v892 = vsel %vm881, %v829, 0
  %v895 = vsel %vm881, %v830, 0
  %v898 = vsel %vm881, %v831, 0
  %v901 = vsel %vm881, %v832, 0
  %v904 = vsel %vm881, %v833, 0
  %v907 = vsel %vm881, %v834, 0
  %v910 = vsel %vm881, %v835, 0
  %v913 = vsel %vm881, %v836, 0
  %v916 = vsel %vm881, %v837, 0
  %v919 = vsel %vm881, %v838, 0
  %v922 = vsel %vm881, %v839, 0
  %v925 = vsel %vm881, %v840, 0
  %v928 = vsel %vm881, %v841, 0
  %930 = vmatprep.subr.bf16.mxu0 0
  %931 = vmatpush1.bf16.msra.mxu0 %v873
  %932 = vmatprep.subr.bf16.mxu0 0
  %933 = vmatpush1.bf16.msra.mxu0 %v874
  %934 = vmatprep.subr.bf16.mxu0 0
  %935 = vmatpush1.bf16.msra.mxu0 %v875
  %936 = vmatprep.subr.bf16.mxu0 0
  %937 = vmatpush1.bf16.msra.mxu0 %v876
  %938 = vmatprep.subr.bf16.mxu0 0
  %939 = vmatpush1.bf16.msra.mxu0 0
  %940 = vmatprep.subr.bf16.mxu0 0
  %941 = vmatpush1.bf16.msra.mxu0 0
  %942 = vmatprep.subr.bf16.mxu0 0
  %943 = vmatpush1.bf16.msra.mxu0 0
  %944 = vmatprep.subr.bf16.mxu0 0
  %945 = vmatpush1.bf16.msra.mxu0 0
  %946 = vmatprep.subr.bf16.mxu0 0
  %947 = vmatpush1.bf16.msra.mxu0 0
  %948 = vmatprep.subr.bf16.mxu0 0
  %949 = vmatpush1.bf16.msra.mxu0 0
  %950 = vmatprep.subr.bf16.mxu0 0
  %951 = vmatpush1.bf16.msra.mxu0 0
  %952 = vmatprep.subr.bf16.mxu0 0
  %953 = vmatpush1.bf16.msra.mxu0 0
  %954 = vmatprep.subr.bf16.mxu0 0
  %955 = vmatpush1.bf16.msra.mxu0 0
  %956 = vmatprep.subr.bf16.mxu0 0
  %957 = vmatpush1.bf16.msra.mxu0 0
  %958 = vmatprep.subr.bf16.mxu0 0
  %959 = vmatpush1.bf16.msra.mxu0 0
  %960 = vmatprep.subr.bf16.mxu0 0
  %961 = vmatpush1.bf16.msra.mxu0 0
  %962 = vmatprep.mubr.bf16.mxu0 0
  %963 = vmatmul.mubr.bf16.gmra.mrb[0].mxu0 %v883
  %v964 = vpop.f32.mrb[0].mxu0
  %v965 = vadd.f32 %v855, %v964
  %v966 = vpop.f32.mrb[0].mxu0
  %v967 = vpop.f32.mrb[0].mxu0
  %v968 = vadd.f32 %v855, %v967
  %v969 = vpop.f32.mrb[0].mxu0
  %970 = vmatprep.mubr.bf16.mxu0 0
  %971 = vmatmul.mubr.bf16.gmra.mrb[0].mxu0 %v886
  %v972 = vpop.f32.mrb[0].mxu0
  %v973 = vadd.f32 %v855, %v972
  %v974 = vpop.f32.mrb[0].mxu0
  %v975 = vpop.f32.mrb[0].mxu0
  %v976 = vadd.f32 %v855, %v975
  %v977 = vpop.f32.mrb[0].mxu0
  %978 = vmatprep.mubr.bf16.mxu0 0
  %979 = vmatmul.mubr.bf16.gmra.mrb[0].mxu0 %v889
  %v980 = vpop.f32.mrb[0].mxu0
  %v981 = vadd.f32 %v855, %v980
  %v982 = vpop.f32.mrb[0].mxu0
  %v983 = vpop.f32.mrb[0].mxu0
  %v984 = vadd.f32 %v855, %v983
  %v985 = vpop.f32.mrb[0].mxu0
  %986 = vmatprep.mubr.bf16.mxu0 0
  %987 = vmatmul.mubr.bf16.gmra.mrb[0].mxu0 %v892
  %v988 = vpop.f32.mrb[0].mxu0
  %v989 = vadd.f32 %v855, %v988
  %v990 = vpop.f32.mrb[0].mxu0
  %v991 = vpop.f32.mrb[0].mxu0
  %v992 = vadd.f32 %v855, %v991
  %v993 = vpop.f32.mrb[0].mxu0
  %994 = vmatprep.mubr.bf16.mxu0 0
  %995 = vmatmul.mubr.bf16.gmra.mrb[0].mxu0 %v895
  %v996 = vpop.f32.mrb[0].mxu0
  %v997 = vadd.f32 %v855, %v996
  %v998 = vpop.f32.mrb[0].mxu0
  %v999 = vpop.f32.mrb[0].mxu0
  %v1000 = vadd.f32 %v855, %v999
  %v1001 = vpop.f32.mrb[0].mxu0
  %1002 = vmatprep.mubr.bf16.mxu0 0
  %1003 = vmatmul.mubr.bf16.gmra.mrb[0].mxu0 %v898
  %v1004 = vpop.f32.mrb[0].mxu0
  %v1005 = vadd.f32 %v855, %v1004
  %v1006 = vpop.f32.mrb[0].mxu0
  %v1007 = vpop.f32.mrb[0].mxu0
  %v1008 = vadd.f32 %v855, %v1007
  %v1009 = vpop.f32.mrb[0].mxu0
  %1010 = vmatprep.mubr.bf16.mxu0 0
  %1011 = vmatmul.mubr.bf16.gmra.mrb[0].mxu0 %v901
  %v1012 = vpop.f32.mrb[0].mxu0
  %v1013 = vadd.f32 %v855, %v1012
  %v1014 = vpop.f32.mrb[0].mxu0
  %v1015 = vpop.f32.mrb[0].mxu0
  %v1016 = vadd.f32 %v855, %v1015
  %v1017 = vpop.f32.mrb[0].mxu0
  %1018 = vmatprep.mubr.bf16.mxu0 0
  %1019 = vmatmul.mubr.bf16.gmra.mrb[0].mxu0 %v904
  %v1020 = vpop.f32.mrb[0].mxu0
  %v1021 = vadd.f32 %v855, %v1020
  %v1022 = vpop.f32.mrb[0].mxu0
  %v1023 = vpop.f32.mrb[0].mxu0
  %v1024 = vadd.f32 %v855, %v1023
  %v1025 = vpop.f32.mrb[0].mxu0
  %1026 = vmatprep.mubr.bf16.mxu0 0
  %1027 = vmatmul.mubr.bf16.gmra.mrb[0].mxu0 %v907
  %v1028 = vpop.f32.mrb[0].mxu0
  %v1029 = vadd.f32 %v855, %v1028
  %v1030 = vpop.f32.mrb[0].mxu0
  %v1031 = vpop.f32.mrb[0].mxu0
  %v1032 = vadd.f32 %v855, %v1031
  %v1033 = vpop.f32.mrb[0].mxu0
  %1034 = vmatprep.mubr.bf16.mxu0 0
  %1035 = vmatmul.mubr.bf16.gmra.mrb[0].mxu0 %v910
  %v1036 = vpop.f32.mrb[0].mxu0
  %v1037 = vadd.f32 %v855, %v1036
  %v1038 = vpop.f32.mrb[0].mxu0
  %v1039 = vpop.f32.mrb[0].mxu0
  %v1040 = vadd.f32 %v855, %v1039
  %v1041 = vpop.f32.mrb[0].mxu0
  %1042 = vmatprep.mubr.bf16.mxu0 0
  %1043 = vmatmul.mubr.bf16.gmra.mrb[0].mxu0 %v913
  %v1044 = vpop.f32.mrb[0].mxu0
  %v1045 = vadd.f32 %v855, %v1044
  %v1046 = vpop.f32.mrb[0].mxu0
  %v1047 = vpop.f32.mrb[0].mxu0
  %v1048 = vadd.f32 %v855, %v1047
  %v1049 = vpop.f32.mrb[0].mxu0
  %1050 = vmatprep.mubr.bf16.mxu0 0
  %1051 = vmatmul.mubr.bf16.gmra.mrb[0].mxu0 %v916
  %v1052 = vpop.f32.mrb[0].mxu0
  %v1053 = vadd.f32 %v855, %v1052
  %v1054 = vpop.f32.mrb[0].mxu0
  %v1055 = vpop.f32.mrb[0].mxu0
  %v1056 = vadd.f32 %v855, %v1055
  %v1057 = vpop.f32.mrb[0].mxu0
  %1058 = vmatprep.mubr.bf16.mxu0 0
  %1059 = vmatmul.mubr.bf16.gmra.mrb[0].mxu0 %v919
  %v1060 = vpop.f32.mrb[0].mxu0
  %v1061 = vadd.f32 %v855, %v1060
  %v1062 = vpop.f32.mrb[0].mxu0
  %v1063 = vpop.f32.mrb[0].mxu0
  %v1064 = vadd.f32 %v855, %v1063
  %v1065 = vpop.f32.mrb[0].mxu0
  %1066 = vmatprep.mubr.bf16.mxu0 0
  %1067 = vmatmul.mubr.bf16.gmra.mrb[0].mxu0 %v922
  %v1068 = vpop.f32.mrb[0].mxu0
  %v1069 = vadd.f32 %v855, %v1068
  %v1070 = vpop.f32.mrb[0].mxu0
  %v1071 = vpop.f32.mrb[0].mxu0
  %v1072 = vadd.f32 %v855, %v1071
  %v1073 = vpop.f32.mrb[0].mxu0
  %1074 = vmatprep.mubr.bf16.mxu0 0
  %1075 = vmatmul.mubr.bf16.gmra.mrb[0].mxu0 %v925
  %v1076 = vpop.f32.mrb[0].mxu0
  %v1077 = vadd.f32 %v855, %v1076
  %v1078 = vpop.f32.mrb[0].mxu0
  %v1079 = vpop.f32.mrb[0].mxu0
  %v1080 = vadd.f32 %v855, %v1079
  %v1081 = vpop.f32.mrb[0].mxu0
  %1082 = vmatprep.mubr.bf16.mxu0 0
  %1083 = vmatmul.mubr.bf16.gmra.mrb[0].mxu0 %v928
  %v1084 = vpop.f32.mrb[0].mxu0
  %v1085 = vadd.f32 %v855, %v1084
  %v1086 = vpop.f32.mrb[0].mxu0
  %v1087 = vpop.f32.mrb[0].mxu0
  %v1088 = vadd.f32 %v855, %v1087
  %v1089 = vpop.f32.mrb[0].mxu0
  %1090 = vdwg.mxu0
  %vm1091 = vcmp.gt.f32.partialorder %v965, 0.0
  %vm1092 = vcmp.gt.f32.partialorder %v968, 0.0
  %vm1093 = vcmp.gt.f32.partialorder %v973, 0.0
  %vm1094 = vcmp.gt.f32.partialorder %v976, 0.0
  %vm1095 = vcmp.gt.f32.partialorder %v981, 0.0
  %vm1096 = vcmp.gt.f32.partialorder %v984, 0.0
  %vm1097 = vcmp.gt.f32.partialorder %v989, 0.0
  %vm1098 = vcmp.gt.f32.partialorder %v992, 0.0
  %vm1099 = vcmp.gt.f32.partialorder %v997, 0.0
  %vm1100 = vcmp.gt.f32.partialorder %v1000, 0.0
  %vm1101 = vcmp.gt.f32.partialorder %v1005, 0.0
  %vm1102 = vcmp.gt.f32.partialorder %v1008, 0.0
  %vm1103 = vcmp.gt.f32.partialorder %v1013, 0.0
  %vm1104 = vcmp.gt.f32.partialorder %v1016, 0.0
  %vm1105 = vcmp.gt.f32.partialorder %v1021, 0.0
  %vm1106 = vcmp.gt.f32.partialorder %v1024, 0.0
  %vm1107 = vcmp.gt.f32.partialorder %v1029, 0.0
  %vm1108 = vcmp.gt.f32.partialorder %v1032, 0.0
  %vm1109 = vcmp.gt.f32.partialorder %v1037, 0.0
  %vm1110 = vcmp.gt.f32.partialorder %v1040, 0.0
  %vm1111 = vcmp.gt.f32.partialorder %v1045, 0.0
  %vm1112 = vcmp.gt.f32.partialorder %v1048, 0.0
  %vm1113 = vcmp.gt.f32.partialorder %v1053, 0.0
  %vm1114 = vcmp.gt.f32.partialorder %v1056, 0.0
  %vm1115 = vcmp.gt.f32.partialorder %v1061, 0.0
  %vm1116 = vcmp.gt.f32.partialorder %v1064, 0.0
  %vm1117 = vcmp.gt.f32.partialorder %v1069, 0.0
  %vm1118 = vcmp.gt.f32.partialorder %v1072, 0.0
  %vm1119 = vcmp.gt.f32.partialorder %v1077, 0.0
  %vm1120 = vcmp.gt.f32.partialorder %v1080, 0.0
  %vm1121 = vcmp.gt.f32.partialorder %v1085, 0.0
  %vm1122 = vcmp.gt.f32.partialorder %v1088, 0.0
  %v1123 = vmul.f32 %v965, 0.01
  %v1124 = vmul.f32 %v968, 0.01
  %v1125 = vmul.f32 %v973, 0.01
  %v1126 = vmul.f32 %v976, 0.01
  %v1127 = vmul.f32 %v981, 0.01
  %v1128 = vmul.f32 %v984, 0.01
  %v1129 = vmul.f32 %v989, 0.01
  %v1130 = vmul.f32 %v992, 0.01
  %v1131 = vmul.f32 %v997, 0.01
  %v1132 = vmul.f32 %v1000, 0.01
  %v1133 = vmul.f32 %v1005, 0.01
  %v1134 = vmul.f32 %v1008, 0.01
  %v1135 = vmul.f32 %v1013, 0.01
  %v1136 = vmul.f32 %v1016, 0.01
  %v1137 = vmul.f32 %v1021, 0.01
  %v1138 = vmul.f32 %v1024, 0.01
  %v1139 = vmul.f32 %v1029, 0.01
  %v1140 = vmul.f32 %v1032, 0.01
  %v1141 = vmul.f32 %v1037, 0.01
  %v1142 = vmul.f32 %v1040, 0.01
  %v1143 = vmul.f32 %v1045, 0.01
  %v1144 = vmul.f32 %v1048, 0.01
  %v1145 = vmul.f32 %v1053, 0.01
  %v1146 = vmul.f32 %v1056, 0.01
  %v1147 = vmul.f32 %v1061, 0.01
  %v1148 = vmul.f32 %v1064, 0.01
  %v1149 = vmul.f32 %v1069, 0.01
  %v1150 = vmul.f32 %v1072, 0.01
  %v1151 = vmul.f32 %v1077, 0.01
  %v1152 = vmul.f32 %v1080, 0.01
  %v1153 = vmul.f32 %v1085, 0.01
  %v1154 = vmul.f32 %v1088, 0.01
  %v1155 = vsel %vm1091, %v965, %v1123
  %v1156 = vsel %vm1092, %v968, %v1124
  %v1157 = vsel %vm1093, %v973, %v1125
  %v1158 = vsel %vm1094, %v976, %v1126
  %v1159 = vsel %vm1095, %v981, %v1127
  %v1160 = vsel %vm1096, %v984, %v1128
  %v1161 = vsel %vm1097, %v989, %v1129
  %v1162 = vsel %vm1098, %v992, %v1130
  %v1163 = vsel %vm1099, %v997, %v1131
  %v1164 = vsel %vm1100, %v1000, %v1132
  %v1165 = vsel %vm1101, %v1005, %v1133
  %v1166 = vsel %vm1102, %v1008, %v1134
  %v1167 = vsel %vm1103, %v1013, %v1135
  %v1168 = vsel %vm1104, %v1016, %v1136
  %v1169 = vsel %vm1105, %v1021, %v1137
  %v1170 = vsel %vm1106, %v1024, %v1138
  %v1171 = vsel %vm1107, %v1029, %v1139
  %v1172 = vsel %vm1108, %v1032, %v1140
  %v1173 = vsel %vm1109, %v1037, %v1141
  %v1174 = vsel %vm1110, %v1040, %v1142
  %v1175 = vsel %vm1111, %v1045, %v1143
  %v1176 = vsel %vm1112, %v1048, %v1144
  %v1177 = vsel %vm1113, %v1053, %v1145
  %v1178 = vsel %vm1114, %v1056, %v1146
  %v1179 = vsel %vm1115, %v1061, %v1147
  %v1180 = vsel %vm1116, %v1064, %v1148
  %v1181 = vsel %vm1117, %v1069, %v1149
  %v1182 = vsel %vm1118, %v1072, %v1150
  %v1183 = vsel %vm1119, %v1077, %v1151
  %v1184 = vsel %vm1120, %v1080, %v1152
  %v1185 = vsel %vm1121, %v1085, %v1153
  %v1186 = vsel %vm1122, %v1088, %v1154
  %v1187 = vpack.c.bf16 %v1156, %v1155
  %v1188 = vpack.c.bf16 %v1158, %v1157
  %v1189 = vpack.c.bf16 %v1160, %v1159
  %v1190 = vpack.c.bf16 %v1162, %v1161
  %v1191 = vpack.c.bf16 %v1164, %v1163
  %v1192 = vpack.c.bf16 %v1166, %v1165
  %v1193 = vpack.c.bf16 %v1168, %v1167
  %v1194 = vpack.c.bf16 %v1170, %v1169
  %v1195 = vpack.c.bf16 %v1172, %v1171
  %v1196 = vpack.c.bf16 %v1174, %v1173
  %v1197 = vpack.c.bf16 %v1176, %v1175
  %v1198 = vpack.c.bf16 %v1178, %v1177
  %v1199 = vpack.c.bf16 %v1180, %v1179
  %v1200 = vpack.c.bf16 %v1182, %v1181
  %v1201 = vpack.c.bf16 %v1184, %v1183
  %v1202 = vpack.c.bf16 %v1186, %v1185
  %v1203 = vld [vmem:[%s7] sm:$0xf]
  %v1204 = vld [vmem:[%s7 + $0x4] sm:$0xf]
  %v1205 = vld [vmem:[%s7 + $0x8] sm:$0xf]
  %v1206 = vld [vmem:[%s7 + $0xc] sm:$0xf]
  %v1207 = vld [vmem:[%s8] sm:$0x1]
  %v1209 = vlaneseq
  %v1210 = vshrl.u32 %v1209, 7
  %v1211 = vsub.s32 0, %v1210
  %v1212 = vrot.slane %v1207, %v1211
  %v1218 = vunpack.c.l.b16 %v1203
  %v1219 = vunpack.c.l.b16 %v1204
  %v1220 = vunpack.c.l.b16 %v1205
  %v1221 = vunpack.c.l.b16 %v1206
  %v1222 = vpack.c.b16 %v1219, %v1218
  %v1223 = vpack.c.b16 %v1221, %v1220
  %v1227 = vsel %vm176, %v1187, 0
  %v1230 = vsel %vm176, %v1188, 0
  %v1233 = vsel %vm176, %v1189, 0
  %v1236 = vsel %vm176, %v1190, 0
  %v1239 = vsel %vm176, %v1191, 0
  %v1242 = vsel %vm176, %v1192, 0
  %v1245 = vsel %vm176, %v1193, 0
  %v1248 = vsel %vm176, %v1194, 0
  %v1251 = vsel %vm176, %v1195, 0
  %v1254 = vsel %vm176, %v1196, 0
  %v1257 = vsel %vm176, %v1197, 0
  %v1260 = vsel %vm176, %v1198, 0
  %v1263 = vsel %vm176, %v1199, 0
  %v1266 = vsel %vm176, %v1200, 0
  %v1269 = vsel %vm176, %v1201, 0
  %v1272 = vsel %vm176, %v1202, 0
  %1274 = vmatprep.subr.bf16.mxu0 0
  %1275 = vmatpush1.bf16.msra.mxu0 %v1222
  %1276 = vmatprep.subr.bf16.mxu0 0
  %1277 = vmatpush1.bf16.msra.mxu0 %v1223
  %1278 = vmatprep.subr.bf16.mxu0 0
  %1279 = vmatpush1.bf16.msra.mxu0 0
  %1280 = vmatprep.subr.bf16.mxu0 0
  %1281 = vmatpush1.bf16.msra.mxu0 0
  %1282 = vmatprep.subr.bf16.mxu0 0
  %1283 = vmatpush1.bf16.msra.mxu0 0
  %1284 = vmatprep.subr.bf16.mxu0 0
  %1285 = vmatpush1.bf16.msra.mxu0 0
  %1286 = vmatprep.subr.bf16.mxu0 0
  %1287 = vmatpush1.bf16.msra.mxu0 0
  %1288 = vmatprep.subr.bf16.mxu0 0
  %1289 = vmatpush1.bf16.msra.mxu0 0
  %1290 = vmatprep.subr.bf16.mxu0 0
  %1291 = vmatpush1.bf16.msra.mxu0 0
  %1292 = vmatprep.subr.bf16.mxu0 0
  %1293 = vmatpush1.bf16.msra.mxu0 0
  %1294 = vmatprep.subr.bf16.mxu0 0
  %1295 = vmatpush1.bf16.msra.mxu0 0
  %1296 = vmatprep.subr.bf16.mxu0 0
  %1297 = vmatpush1.bf16.msra.mxu0 0
  %1298 = vmatprep.subr.bf16.mxu0 0
  %1299 = vmatpush1.bf16.msra.mxu0 0
  %1300 = vmatprep.subr.bf16.mxu0 0
  %1301 = vmatpush1.bf16.msra.mxu0 0
  %1302 = vmatprep.subr.bf16.mxu0 0
  %1303 = vmatpush1.bf16.msra.mxu0 0
  %1304 = vmatprep.subr.bf16.mxu0 0
  %1305 = vmatpush1.bf16.msra.mxu0 0
  %1306 = vmatprep.mubr.bf16.mxu0 0
  %1307 = vmatmul.mubr.bf16.gmra.mrb[0].mxu0 %v1227
  %v1308 = vpop.f32.mrb[0].mxu0
  %v1309 = vadd.f32 %v1212, %v1308
  %v1310 = vpop.f32.mrb[0].mxu0
  %v1311 = vpop.f32.mrb[0].mxu0
  %v1312 = vadd.f32 %v1212, %v1311
  %v1313 = vpop.f32.mrb[0].mxu0
  %1314 = vmatprep.mubr.bf16.mxu0 0
  %1315 = vmatmul.mubr.bf16.gmra.mrb[0].mxu0 %v1230
  %v1316 = vpop.f32.mrb[0].mxu0
  %v1317 = vadd.f32 %v1212, %v1316
  %v1318 = vpop.f32.mrb[0].mxu0
  %v1319 = vpop.f32.mrb[0].mxu0
  %v1320 = vadd.f32 %v1212, %v1319
  %v1321 = vpop.f32.mrb[0].mxu0
  %1322 = vmatprep.mubr.bf16.mxu0 0
  %1323 = vmatmul.mubr.bf16.gmra.mrb[0].mxu0 %v1233
  %v1324 = vpop.f32.mrb[0].mxu0
  %v1325 = vadd.f32 %v1212, %v1324
  %v1326 = vpop.f32.mrb[0].mxu0
  %v1327 = vpop.f32.mrb[0].mxu0
  %v1328 = vadd.f32 %v1212, %v1327
  %v1329 = vpop.f32.mrb[0].mxu0
  %1330 = vmatprep.mubr.bf16.mxu0 0
  %1331 = vmatmul.mubr.bf16.gmra.mrb[0].mxu0 %v1236
  %v1332 = vpop.f32.mrb[0].mxu0
  %v1333 = vadd.f32 %v1212, %v1332
  %v1334 = vpop.f32.mrb[0].mxu0
  %v1335 = vpop.f32.mrb[0].mxu0
  %v1336 = vadd.f32 %v1212, %v1335
  %v1337 = vpop.f32.mrb[0].mxu0
  %1338 = vmatprep.mubr.bf16.mxu0 0
  %1339 = vmatmul.mubr.bf16.gmra.mrb[0].mxu0 %v1239
  %v1340 = vpop.f32.mrb[0].mxu0
  %v1341 = vadd.f32 %v1212, %v1340
  %v1342 = vpop.f32.mrb[0].mxu0
  %v1343 = vpop.f32.mrb[0].mxu0
  %v1344 = vadd.f32 %v1212, %v1343
  %v1345 = vpop.f32.mrb[0].mxu0
  %1346 = vmatprep.mubr.bf16.mxu0 0
  %1347 = vmatmul.mubr.bf16.gmra.mrb[0].mxu0 %v1242
  %v1348 = vpop.f32.mrb[0].mxu0
  %v1349 = vadd.f32 %v1212, %v1348
  %v1350 = vpop.f32.mrb[0].mxu0
  %v1351 = vpop.f32.mrb[0].mxu0
  %v1352 = vadd.f32 %v1212, %v1351
  %v1353 = vpop.f32.mrb[0].mxu0
  %1354 = vmatprep.mubr.bf16.mxu0 0
  %1355 = vmatmul.mubr.bf16.gmra.mrb[0].mxu0 %v1245
  %v1356 = vpop.f32.mrb[0].mxu0
  %v1357 = vadd.f32 %v1212, %v1356
  %v1358 = vpop.f32.mrb[0].mxu0
  %v1359 = vpop.f32.mrb[0].mxu0
  %v1360 = vadd.f32 %v1212, %v1359
  %v1361 = vpop.f32.mrb[0].mxu0
  %1362 = vmatprep.mubr.bf16.mxu0 0
  %1363 = vmatmul.mubr.bf16.gmra.mrb[0].mxu0 %v1248
  %v1364 = vpop.f32.mrb[0].mxu0
  %v1365 = vadd.f32 %v1212, %v1364
  %v1366 = vpop.f32.mrb[0].mxu0
  %v1367 = vpop.f32.mrb[0].mxu0
  %v1368 = vadd.f32 %v1212, %v1367
  %v1369 = vpop.f32.mrb[0].mxu0
  %1370 = vmatprep.mubr.bf16.mxu0 0
  %1371 = vmatmul.mubr.bf16.gmra.mrb[0].mxu0 %v1251
  %v1372 = vpop.f32.mrb[0].mxu0
  %v1373 = vadd.f32 %v1212, %v1372
  %v1374 = vpop.f32.mrb[0].mxu0
  %v1375 = vpop.f32.mrb[0].mxu0
  %v1376 = vadd.f32 %v1212, %v1375
  %v1377 = vpop.f32.mrb[0].mxu0
  %1378 = vmatprep.mubr.bf16.mxu0 0
  %1379 = vmatmul.mubr.bf16.gmra.mrb[0].mxu0 %v1254
  %v1380 = vpop.f32.mrb[0].mxu0
  %v1381 = vadd.f32 %v1212, %v1380
  %v1382 = vpop.f32.mrb[0].mxu0
  %v1383 = vpop.f32.mrb[0].mxu0
  %v1384 = vadd.f32 %v1212, %v1383
  %v1385 = vpop.f32.mrb[0].mxu0
  %1386 = vmatprep.mubr.bf16.mxu0 0
  %1387 = vmatmul.mubr.bf16.gmra.mrb[0].mxu0 %v1257
  %v1388 = vpop.f32.mrb[0].mxu0
  %v1389 = vadd.f32 %v1212, %v1388
  %v1390 = vpop.f32.mrb[0].mxu0
  %v1391 = vpop.f32.mrb[0].mxu0
  %v1392 = vadd.f32 %v1212, %v1391
  %v1393 = vpop.f32.mrb[0].mxu0
  %1394 = vmatprep.mubr.bf16.mxu0 0
  %1395 = vmatmul.mubr.bf16.gmra.mrb[0].mxu0 %v1260
  %v1396 = vpop.f32.mrb[0].mxu0
  %v1397 = vadd.f32 %v1212, %v1396
  %v1398 = vpop.f32.mrb[0].mxu0
  %v1399 = vpop.f32.mrb[0].mxu0
  %v1400 = vadd.f32 %v1212, %v1399
  %v1401 = vpop.f32.mrb[0].mxu0
  %1402 = vmatprep.mubr.bf16.mxu0 0
  %1403 = vmatmul.mubr.bf16.gmra.mrb[0].mxu0 %v1263
  %v1404 = vpop.f32.mrb[0].mxu0
  %v1405 = vadd.f32 %v1212, %v1404
  %v1406 = vpop.f32.mrb[0].mxu0
  %v1407 = vpop.f32.mrb[0].mxu0
  %v1408 = vadd.f32 %v1212, %v1407
  %v1409 = vpop.f32.mrb[0].mxu0
  %1410 = vmatprep.mubr.bf16.mxu0 0
  %1411 = vmatmul.mubr.bf16.gmra.mrb[0].mxu0 %v1266
  %v1412 = vpop.f32.mrb[0].mxu0
  %v1413 = vadd.f32 %v1212, %v1412
  %v1414 = vpop.f32.mrb[0].mxu0
  %v1415 = vpop.f32.mrb[0].mxu0
  %v1416 = vadd.f32 %v1212, %v1415
  %v1417 = vpop.f32.mrb[0].mxu0
  %1418 = vmatprep.mubr.bf16.mxu0 0
  %1419 = vmatmul.mubr.bf16.gmra.mrb[0].mxu0 %v1269
  %v1420 = vpop.f32.mrb[0].mxu0
  %v1421 = vadd.f32 %v1212, %v1420
  %v1422 = vpop.f32.mrb[0].mxu0
  %v1423 = vpop.f32.mrb[0].mxu0
  %v1424 = vadd.f32 %v1212, %v1423
  %v1425 = vpop.f32.mrb[0].mxu0
  %1426 = vmatprep.mubr.bf16.mxu0 0
  %1427 = vmatmul.mubr.bf16.gmra.mrb[0].mxu0 %v1272
  %v1428 = vpop.f32.mrb[0].mxu0
  %v1429 = vadd.f32 %v1212, %v1428
  %v1430 = vpop.f32.mrb[0].mxu0
  %v1431 = vpop.f32.mrb[0].mxu0
  %v1432 = vadd.f32 %v1212, %v1431
  %v1433 = vpop.f32.mrb[0].mxu0
  %1434 = vdwg.mxu0
  %vm1435 = vcmp.gt.f32.partialorder %v1309, 0.0
  %vm1436 = vcmp.gt.f32.partialorder %v1312, 0.0
  %vm1437 = vcmp.gt.f32.partialorder %v1317, 0.0
  %vm1438 = vcmp.gt.f32.partialorder %v1320, 0.0
  %vm1439 = vcmp.gt.f32.partialorder %v1325, 0.0
  %vm1440 = vcmp.gt.f32.partialorder %v1328, 0.0
  %vm1441 = vcmp.gt.f32.partialorder %v1333, 0.0
  %vm1442 = vcmp.gt.f32.partialorder %v1336, 0.0
  %vm1443 = vcmp.gt.f32.partialorder %v1341, 0.0
  %vm1444 = vcmp.gt.f32.partialorder %v1344, 0.0
  %vm1445 = vcmp.gt.f32.partialorder %v1349, 0.0
  %vm1446 = vcmp.gt.f32.partialorder %v1352, 0.0
  %vm1447 = vcmp.gt.f32.partialorder %v1357, 0.0
  %vm1448 = vcmp.gt.f32.partialorder %v1360, 0.0
  %vm1449 = vcmp.gt.f32.partialorder %v1365, 0.0
  %vm1450 = vcmp.gt.f32.partialorder %v1368, 0.0
  %vm1451 = vcmp.gt.f32.partialorder %v1373, 0.0
  %vm1452 = vcmp.gt.f32.partialorder %v1376, 0.0
  %vm1453 = vcmp.gt.f32.partialorder %v1381, 0.0
  %vm1454 = vcmp.gt.f32.partialorder %v1384, 0.0
  %vm1455 = vcmp.gt.f32.partialorder %v1389, 0.0
  %vm1456 = vcmp.gt.f32.partialorder %v1392, 0.0
  %vm1457 = vcmp.gt.f32.partialorder %v1397, 0.0
  %vm1458 = vcmp.gt.f32.partialorder %v1400, 0.0
  %vm1459 = vcmp.gt.f32.partialorder %v1405, 0.0
  %vm1460 = vcmp.gt.f32.partialorder %v1408, 0.0
  %vm1461 = vcmp.gt.f32.partialorder %v1413, 0.0
  %vm1462 = vcmp.gt.f32.partialorder %v1416, 0.0
  %vm1463 = vcmp.gt.f32.partialorder %v1421, 0.0
  %vm1464 = vcmp.gt.f32.partialorder %v1424, 0.0
  %vm1465 = vcmp.gt.f32.partialorder %v1429, 0.0
  %vm1466 = vcmp.gt.f32.partialorder %v1432, 0.0
  %v1467 = vmul.f32 %v1309, 0.01
  %v1468 = vmul.f32 %v1312, 0.01
  %v1469 = vmul.f32 %v1317, 0.01
  %v1470 = vmul.f32 %v1320, 0.01
  %v1471 = vmul.f32 %v1325, 0.01
  %v1472 = vmul.f32 %v1328, 0.01
  %v1473 = vmul.f32 %v1333, 0.01
  %v1474 = vmul.f32 %v1336, 0.01
  %v1475 = vmul.f32 %v1341, 0.01
  %v1476 = vmul.f32 %v1344, 0.01
  %v1477 = vmul.f32 %v1349, 0.01
  %v1478 = vmul.f32 %v1352, 0.01
  %v1479 = vmul.f32 %v1357, 0.01
  %v1480 = vmul.f32 %v1360, 0.01
  %v1481 = vmul.f32 %v1365, 0.01
  %v1482 = vmul.f32 %v1368, 0.01
  %v1483 = vmul.f32 %v1373, 0.01
  %v1484 = vmul.f32 %v1376, 0.01
  %v1485 = vmul.f32 %v1381, 0.01
  %v1486 = vmul.f32 %v1384, 0.01
  %v1487 = vmul.f32 %v1389, 0.01
  %v1488 = vmul.f32 %v1392, 0.01
  %v1489 = vmul.f32 %v1397, 0.01
  %v1490 = vmul.f32 %v1400, 0.01
  %v1491 = vmul.f32 %v1405, 0.01
  %v1492 = vmul.f32 %v1408, 0.01
  %v1493 = vmul.f32 %v1413, 0.01
  %v1494 = vmul.f32 %v1416, 0.01
  %v1495 = vmul.f32 %v1421, 0.01
  %v1496 = vmul.f32 %v1424, 0.01
  %v1497 = vmul.f32 %v1429, 0.01
  %v1498 = vmul.f32 %v1432, 0.01
  %v1499 = vsel %vm1435, %v1309, %v1467
  %v1500 = vsel %vm1436, %v1312, %v1468
  %v1501 = vsel %vm1437, %v1317, %v1469
  %v1502 = vsel %vm1438, %v1320, %v1470
  %v1503 = vsel %vm1439, %v1325, %v1471
  %v1504 = vsel %vm1440, %v1328, %v1472
  %v1505 = vsel %vm1441, %v1333, %v1473
  %v1506 = vsel %vm1442, %v1336, %v1474
  %v1507 = vsel %vm1443, %v1341, %v1475
  %v1508 = vsel %vm1444, %v1344, %v1476
  %v1509 = vsel %vm1445, %v1349, %v1477
  %v1510 = vsel %vm1446, %v1352, %v1478
  %v1511 = vsel %vm1447, %v1357, %v1479
  %v1512 = vsel %vm1448, %v1360, %v1480
  %v1513 = vsel %vm1449, %v1365, %v1481
  %v1514 = vsel %vm1450, %v1368, %v1482
  %v1515 = vsel %vm1451, %v1373, %v1483
  %v1516 = vsel %vm1452, %v1376, %v1484
  %v1517 = vsel %vm1453, %v1381, %v1485
  %v1518 = vsel %vm1454, %v1384, %v1486
  %v1519 = vsel %vm1455, %v1389, %v1487
  %v1520 = vsel %vm1456, %v1392, %v1488
  %v1521 = vsel %vm1457, %v1397, %v1489
  %v1522 = vsel %vm1458, %v1400, %v1490
  %v1523 = vsel %vm1459, %v1405, %v1491
  %v1524 = vsel %vm1460, %v1408, %v1492
  %v1525 = vsel %vm1461, %v1413, %v1493
  %v1526 = vsel %vm1462, %v1416, %v1494
  %v1527 = vsel %vm1463, %v1421, %v1495
  %v1528 = vsel %vm1464, %v1424, %v1496
  %v1529 = vsel %vm1465, %v1429, %v1497
  %v1530 = vsel %vm1466, %v1432, %v1498
  %v1531 = vld [vmem:[%s9] sm:$0x1]
  %v1532 = vpack.c.bf16 %v1500, %v1499
  %v1533 = vpack.c.bf16 %v1502, %v1501
  %v1534 = vpack.c.bf16 %v1504, %v1503
  %v1535 = vpack.c.bf16 %v1506, %v1505
  %v1536 = vpack.c.bf16 %v1508, %v1507
  %v1537 = vpack.c.bf16 %v1510, %v1509
  %v1538 = vpack.c.bf16 %v1512, %v1511
  %v1539 = vpack.c.bf16 %v1514, %v1513
  %v1540 = vpack.c.bf16 %v1516, %v1515
  %v1541 = vpack.c.bf16 %v1518, %v1517
  %v1542 = vpack.c.bf16 %v1520, %v1519
  %v1543 = vpack.c.bf16 %v1522, %v1521
  %v1544 = vpack.c.bf16 %v1524, %v1523
  %v1545 = vpack.c.bf16 %v1526, %v1525
  %v1546 = vpack.c.bf16 %v1528, %v1527
  %v1547 = vpack.c.bf16 %v1530, %v1529
  %v1548 = vld [vmem:[#allocation2] sm:$0x1]
  %1550 = vset.pattern.permute.xlu0 0
  %1551 = vperm.xlu0 %1550, %v1548
  %v1552 = vpop.permute.xlu0 %1551
  %v1554 = vlaneseq
  %v1555 = vshrl.u32 %v1554, 7
  %v1556 = vsub.s32 0, %v1555
  %v1557 = vrot.slane %v1552, %v1556
  %vm1558 = vcmask 130048
  %v1560 = vsel %vm1558, %v1531, 0
  %v1563 = vsel %vm1558, %v1532, 0
  %v1566 = vsel %vm1558, %v1533, 0
  %v1569 = vsel %vm1558, %v1534, 0
  %v1572 = vsel %vm1558, %v1535, 0
  %v1575 = vsel %vm1558, %v1536, 0
  %v1578 = vsel %vm1558, %v1537, 0
  %v1581 = vsel %vm1558, %v1538, 0
  %v1584 = vsel %vm1558, %v1539, 0
  %v1587 = vsel %vm1558, %v1540, 0
  %v1590 = vsel %vm1558, %v1541, 0
  %v1593 = vsel %vm1558, %v1542, 0
  %v1596 = vsel %vm1558, %v1543, 0
  %v1599 = vsel %vm1558, %v1544, 0
  %v1602 = vsel %vm1558, %v1545, 0
  %v1605 = vsel %vm1558, %v1546, 0
  %v1608 = vsel %vm1558, %v1547, 0
  %1610 = vmatprep.subr.bf16.mxu0 0
  %1611 = vmatpush1.bf16.xpose.msra.mxu0 %v1563
  %1612 = vmatprep.subr.bf16.mxu0 0
  %1613 = vmatpush1.bf16.xpose.msra.mxu0 %v1566
  %1614 = vmatprep.subr.bf16.mxu0 0
  %1615 = vmatpush1.bf16.xpose.msra.mxu0 %v1569
  %1616 = vmatprep.subr.bf16.mxu0 0
  %1617 = vmatpush1.bf16.xpose.msra.mxu0 %v1572
  %1618 = vmatprep.subr.bf16.mxu0 0
  %1619 = vmatpush1.bf16.xpose.msra.mxu0 %v1575
  %1620 = vmatprep.subr.bf16.mxu0 0
  %1621 = vmatpush1.bf16.xpose.msra.mxu0 %v1578
  %1622 = vmatprep.subr.bf16.mxu0 0
  %1623 = vmatpush1.bf16.xpose.msra.mxu0 %v1581
  %1624 = vmatprep.subr.bf16.mxu0 0
  %1625 = vmatpush1.bf16.xpose.msra.mxu0 %v1584
  %1626 = vmatprep.subr.bf16.mxu0 0
  %1627 = vmatpush1.bf16.xpose.msra.mxu0 %v1587
  %1628 = vmatprep.subr.bf16.mxu0 0
  %1629 = vmatpush1.bf16.xpose.msra.mxu0 %v1590
  %1630 = vmatprep.subr.bf16.mxu0 0
  %1631 = vmatpush1.bf16.xpose.msra.mxu0 %v1593
  %1632 = vmatprep.subr.bf16.mxu0 0
  %1633 = vmatpush1.bf16.xpose.msra.mxu0 %v1596
  %1634 = vmatprep.subr.bf16.mxu0 0
  %1635 = vmatpush1.bf16.xpose.msra.mxu0 %v1599
  %1636 = vmatprep.subr.bf16.mxu0 0
  %1637 = vmatpush1.bf16.xpose.msra.mxu0 %v1602
  %1638 = vmatprep.subr.bf16.mxu0 0
  %1639 = vmatpush1.bf16.xpose.msra.mxu0 %v1605
  %1640 = vmatprep.subr.bf16.mxu0 0
  %1641 = vmatpush1.bf16.xpose.msra.mxu0 %v1608
  %1642 = vmatprep.mubr.bf16.mxu0 0
  %1643 = vmatmul.mubr.bf16.gmra.mrb[0].mxu0 %v1560
  %v1644 = vpop.f32.mrb[0].mxu0
  %v1645 = vadd.f32 %v1557, %v1644
  %v1646 = vpop.f32.mrb[0].mxu0
  %v1647 = vadd.f32 %v1557, %v1646
  %v1648 = vpop.f32.mrb[0].mxu0
  %v1649 = vpop.f32.mrb[0].mxu0
  %1650 = vdwg.mxu0
  %v1653 = vcombine.low %v1645, %v1647
  %v1655 = vunpack.c.l.s4 1966171168
  %v1656 = vunpack.c.0.s8 %v1655
  %v1657 = vlaneseq
  %v1658 = vshrl.u32 %v1657, 7
  %v1659 = vsub.s32 %v1656, %v1658
  %v1660 = vrot.slane %v1653, %v1659
  %v1662 = vunpack.c.l.s4 1966171168
  %v1663 = vunpack.c.0.s8 %v1662
  %v1664 = vlaneseq
  %v1665 = vshrl.u32 %v1664, 7
  %v1666 = vsub.s32 %v1663, %v1665
  %v1667 = vrot.slane %v1660, %v1666
  %v1669 = vlaneseq
  %vm1670 = vcmp.ge.s32.totalorder %v1669, 0
  %vm1671 = vcmp.lt.s32.totalorder %v1669, 256
  %vm1672 = vmand %vm1670, %vm1671
  %1673 = vst.msk [vmem:[%s11] sm:$0x3] %vm1672, %v1667
  // Predicated region
  $region46: #{_enhanced_mlp_forward_impl.1} parent=0 // pred_check
    _
  $region47: #{_enhanced_mlp_forward_impl.1} parent=0 // pred_check_branch
    %1675 = sbr.rel (0) target = $region49
  $region48: #{_enhanced_mlp_forward_impl.1} parent=0 // pred_region
    _
  $region49: #{_enhanced_mlp_forward_impl.1} parent=0 // pred_fallthru
    _
  // Predicated region
  $region50: #{_enhanced_mlp_forward_impl.1} parent=0 // pred_check
    _
  $region51: #{_enhanced_mlp_forward_impl.1} parent=0 // pred_check_branch
    %1677 = sbr.rel (0) target = $region53
  $region52: #{_enhanced_mlp_forward_impl.1} parent=0 // pred_region
    _
  $region53: #{_enhanced_mlp_forward_impl.1} parent=0 // pred_fallthru
    _

</llo_original>
